<compile_context>
chip_gen: v7x
topology: tpu7x:2x2x1
jax: 0.10.0
libtpu: 0.0.40
codegen_flags: <defaults>
</compile_context>

<pallas_src>
import functools

import jax
import jax.numpy as jnp
from jax.experimental import pallas as pl
from jax.experimental.pallas import tpu as pltpu


# -----------------------------------------------------------------------------
# Genotype (fixed, DARTS-style): list of nodes, each a list of (op, input_state)
# -----------------------------------------------------------------------------
GENOTYPE_NORMAL = [
    [("sep_conv_3x3", 0), ("skip_connect", 1)],   # node 2
    [("avg_pool_3x3", 0), ("sep_conv_3x3", 2)],   # node 3
]
NORMAL_CONCAT = [2, 3]

# BN slot indices inside the packed (7, W*C) scale/shift tensors.
_BN_PRE0, _BN_PRE1 = 0, 1
_BN_SEP = {0: (2, 3), 1: (4, 5)}   # sep-conv k -> (bn1, bn2)
_BN_POOL = 6


# -----------------------------------------------------------------------------
# Fused whole-cell kernel (one grid step = B batch images, lane-dense layout)
#   activations: (R, W*C) with R = B*H rows, lane index = w*C + c
# -----------------------------------------------------------------------------
def _cell_kernel(s0_ref, s1_ref, w0_ref, w1_ref, dw_ref, pw_ref,
                 bns_ref, bnb_ref, o_ref, *, H, W, C):
    f32 = jnp.float32
    R = s0_ref.shape[0]          # B*H rows in this block
    WC = W * C

    # ---- per-step constants: border masks + pool reciprocal (no per-tap work)
    h_idx = jax.lax.broadcasted_iota(jnp.int32, (R, WC), 0) % H
    lane = jax.lax.broadcasted_iota(jnp.int32, (R, WC), 1)
    top = h_idx == 0            # rows with no h-1 neighbour (also batch fences)
    bot = h_idx == H - 1        # rows with no h+1 neighbour
    left = lane < C             # w == 0 lanes (no w-1 neighbour)
    right = lane >= WC - C      # w == W-1 lanes (no w+1 neighbour)
    # count_include_pad=False divisor is in {4,6,9}; use reciprocal multiply.
    pool_recip = (jnp.where(top | bot, 0.5, 1.0 / 3.0) *
                  jnp.where(left | right, 0.5, 1.0 / 3.0))

    # ---- zero-padded neighbour views: pltpu.roll (XLU) + one select (VPU)
    def nb_up(x):     # value of x at (h-1, w); zero at h == 0
        return jnp.where(top, 0.0, pltpu.roll(x, shift=1, axis=0))

    def nb_down(x):   # x at (h+1, w); zero at h == H-1
        return jnp.where(bot, 0.0, pltpu.roll(x, shift=R - 1, axis=0))

    def nb_left(x):   # x at (h, w-1); zero at w == 0  (lane roll by +C)
        return jnp.where(left, 0.0, pltpu.roll(x, shift=C, axis=1))

    def nb_right(x):  # x at (h, w+1); zero at w == W-1 (lane roll by -C)
        return jnp.where(right, 0.0, pltpu.roll(x, shift=WC - C, axis=1))

    def conv1x1_bn(x, wblk, bn_idx, relu):
        """(optional ReLU) -> 1x1 conv as a lane-dense block-diagonal MXU matmul
        (R, W*Cin) @ (W*Cin, W*C) -> folded BN (scale/shift already lane-tiled)."""
        xin = jnp.maximum(x, 0.0) if relu else x
        y = jnp.dot(xin, wblk, preferred_element_type=f32)
        return y * bns_ref[bn_idx] + bnb_ref[bn_idx]

    def dw3x3_relu(x, dw_idx):
        """ReLU -> depthwise 3x3 (stride 1, pad 1).  Taps grouped by output
        column offset so the whole pass needs 4 rolls + 4 masks + 9 FMAs."""
        xr = jnp.maximum(x, 0.0)                 # ReLU once; relu(0-pad) == 0
        w9 = dw_ref[dw_idx]                      # (9, W*C): tap t = i*3 + j
        xa = nb_up(xr)                           # x[h-1, w]
        xb = nb_down(xr)                         # x[h+1, w]
        g0 = xa * w9[0] + xr * w9[3] + xb * w9[6]    # column taps j=0 (need w-1)
        g1 = xa * w9[1] + xr * w9[4] + xb * w9[7]    # j=1 (center)
        g2 = xa * w9[2] + xr * w9[5] + xb * w9[8]    # j=2 (need w+1)
        return nb_left(g0) + g1 + nb_right(g2)

    def sep_conv3x3(x, k):
        # SepConv = [ReLU, dw3x3, pw1x1, BN] x 2   (DropPath_ = identity)
        bn1, bn2 = _BN_SEP[k]
        y = dw3x3_relu(x, 2 * k)
        y = conv1x1_bn(y, pw_ref[2 * k], bn1, relu=False)
        y = dw3x3_relu(y, 2 * k + 1)
        y = conv1x1_bn(y, pw_ref[2 * k + 1], bn2, relu=False)
        return y

    def avg_pool3x3_bn(x, bn_idx):
        # AvgPool 3x3, stride 1, pad 1, count_include_pad=False -> folded BN.
        rowsum = nb_up(x) + x + nb_down(x)
        total = nb_left(rowsum) + rowsum + nb_right(rowsum)
        y = total * pool_recip
        return y * bns_ref[bn_idx] + bnb_ref[bn_idx]

    # preproc0 / preproc1: StdConv = ReLU -> 1x1 conv -> BN
    s0p = conv1x1_bn(s0_ref[...], w0_ref[...], _BN_PRE0, relu=True)
    s1p = conv1x1_bn(s1_ref[...], w1_ref[...], _BN_PRE1, relu=True)

    # node 2: sep_conv_3x3(s0p) + skip_connect(s1p)
    n2 = sep_conv3x3(s0p, 0) + s1p
    # node 3: avg_pool_3x3(s0p) + sep_conv_3x3(n2)
    n3 = avg_pool3x3_bn(s0p, _BN_POOL) + sep_conv3x3(n2, 1)

    # concat(states[2], states[3]) -> lane-dense output slab (R, 2*W*C);
    # both stores are lane-aligned (offset 0 and W*C = multiple of 128).
    o_ref[:, 0:WC] = n2.astype(o_ref.dtype)
    o_ref[:, WC:2 * WC] = n3.astype(o_ref.dtype)


# -----------------------------------------------------------------------------
# Parameter packing for the fused lane-dense kernel (fixed genotype above)
# -----------------------------------------------------------------------------
def _pack_params(params, W):
    sep_a = params["dag"][0][0]        # node 2, edge 0: sep_conv_3x3
    sep_b = params["dag"][1][1]        # node 3, edge 1: sep_conv_3x3
    pool_bn = params["dag"][1][0]["bn"]
    eyeW = jnp.eye(W, dtype=jnp.float32)

    def blockdiag(w):                  # (Cin, Cout) -> (W*Cin, W*Cout) block diag
        return jnp.kron(eyeW, w.astype(jnp.float32))

    def lanes(v):                      # (C,) -> (W*C,), lane index = w*C + c
        return jnp.tile(v.astype(jnp.float32), W)

    w0_blk = blockdiag(params["pre0_w"])
    w1_blk = blockdiag(params["pre1_w"])
    pw_all = jnp.stack([blockdiag(sep_a["pw1"]), blockdiag(sep_a["pw2"]),
                        blockdiag(sep_b["pw1"]), blockdiag(sep_b["pw2"])])
    dw_all = jnp.stack([jnp.tile(sep_a["dw1"], (1, W)), jnp.tile(sep_a["dw2"], (1, W)),
                        jnp.tile(sep_b["dw1"], (1, W)), jnp.tile(sep_b["dw2"], (1, W))])
    bns = jnp.stack([lanes(x) for x in (
        params["pre0_bn"][0], params["pre1_bn"][0],
        sep_a["bn1"][0], sep_a["bn2"][0],
        sep_b["bn1"][0], sep_b["bn2"][0], pool_bn[0])])
    bnb = jnp.stack([lanes(x) for x in (
        params["pre0_bn"][1], params["pre1_bn"][1],
        sep_a["bn1"][1], sep_a["bn2"][1],
        sep_b["bn1"][1], sep_b["bn2"][1], pool_bn[1])])
    return w0_blk, w1_blk, dw_all, pw_all, bns, bnb


def augment_cell_forward(s0_nchw, s1_nchw, params):
    N, C_pp, H, W = s0_nchw.shape
    C_p = s1_nchw.shape[1]
    C = params["pre0_w"].shape[1]
    WC = W * C

    # NCHW (PyTorch) -> lane-dense (N*H, W*Cin), lane index = w*Cin + ci
    s0 = jnp.transpose(s0_nchw, (0, 2, 3, 1)).astype(jnp.float32).reshape(N * H, W * C_pp)
    s1 = jnp.transpose(s1_nchw, (0, 2, 3, 1)).astype(jnp.float32).reshape(N * H, W * C_p)
    w0_blk, w1_blk, dw_all, pw_all, bns, bnb = _pack_params(params, W)

    # Two grid steps (B = N/2 images each) so both v7x TensorCores get a block;
    # on v5e/v6e the two steps simply pipeline on the single TC.
    G = 2 if (N % 2 == 0 and N >= 2) else 1
    B = N // G
    R = B * H
    assert R % 8 == 0, "block row count (B*H) must be sublane aligned"

    out2d = pl.pallas_call(
        functools.partial(_cell_kernel, H=H, W=W, C=C),
        out_shape=jax.ShapeDtypeStruct((N * H, 2 * WC), jnp.float32),
        grid=(G,),
        in_specs=[
            pl.BlockSpec((R, W * C_pp), lambda g: (g, 0)),       # s0 rows
            pl.BlockSpec((R, W * C_p), lambda g: (g, 0)),        # s1 rows
            pl.BlockSpec((W * C_pp, WC), lambda g: (0, 0)),      # pre0 block-diag 1x1 w
            pl.BlockSpec((W * C_p, WC), lambda g: (0, 0)),       # pre1 block-diag 1x1 w
            pl.BlockSpec((4, 9, WC), lambda g: (0, 0, 0)),       # dw weights (lane-tiled)
            pl.BlockSpec((4, WC, WC), lambda g: (0, 0, 0)),      # pw block-diag weights
            pl.BlockSpec((7, WC), lambda g: (0, 0)),             # BN scales (lane-tiled)
            pl.BlockSpec((7, WC), lambda g: (0, 0)),             # BN shifts (lane-tiled)
        ],
        out_specs=pl.BlockSpec((R, 2 * WC), lambda g: (g, 0)),
        compiler_params=pltpu.CompilerParams(
            dimension_semantics=("parallel",),
            vmem_limit_bytes=32 * 1024 * 1024),
    )(s0, s1, w0_blk, w1_blk, dw_all, pw_all, bns, bnb)

    # (N*H, 2*W*C) -> (N, H, 2, W, C) -> NCHW concat over nodes: (N, 2C, H, W)
    out = out2d.reshape(N, H, 2, W, C)
    return jnp.transpose(out, (0, 2, 4, 1, 3)).reshape(N, 2 * C, H, W)


# -----------------------------------------------------------------------------
# Deterministic parameter init (shapes as in the PyTorch module's __init__)
# -----------------------------------------------------------------------------
def make_bn_params(key, C):
    k1, k2 = jax.random.split(key)
    gamma = 1.0 + 0.1 * jax.random.normal(k1, (C,), jnp.float32)
    beta = 0.1 * jax.random.normal(k2, (C,), jnp.float32)
    mean = jnp.zeros((C,), jnp.float32)
    var = jnp.ones((C,), jnp.float32)
    eps = 1e-5
    scale = gamma / jnp.sqrt(var + eps)
    shift = beta - mean * scale
    return scale, shift


def make_sepconv_params(key, C):
    ks = jax.random.split(key, 6)
    return {
        "dw1": 0.3 * jax.random.normal(ks[0], (9, C), jnp.float32),
        "pw1": 0.3 * jax.random.normal(ks[1], (C, C), jnp.float32),
        "bn1": make_bn_params(ks[2], C),
        "dw2": 0.3 * jax.random.normal(ks[3], (9, C), jnp.float32),
        "pw2": 0.3 * jax.random.normal(ks[4], (C, C), jnp.float32),
        "bn2": make_bn_params(ks[5], C),
    }


def init_params(key, C_pp, C_p, C):
    keys = jax.random.split(key, 8)
    params = {
        "pre0_w": 0.2 * jax.random.normal(keys[0], (C_pp, C), jnp.float32),
        "pre0_bn": make_bn_params(keys[1], C),
        "pre1_w": 0.2 * jax.random.normal(keys[2], (C_p, C), jnp.float32),
        "pre1_bn": make_bn_params(keys[3], C),
    }
    dag, kidx = [], 4
    for edges in GENOTYPE_NORMAL:
        row = []
        for op_name, _ in edges:
            k = keys[kidx]
            kidx += 1
            if op_name == "sep_conv_3x3":
                row.append(make_sepconv_params(k, C))
            elif op_name == "avg_pool_3x3":
                row.append({"bn": make_bn_params(k, C)})
            else:
                row.append({})
        dag.append(row)
    params["dag"] = dag
    return params


# -----------------------------------------------------------------------------
# Pure-JAX reference (same math, no Pallas) for a correctness check
# -----------------------------------------------------------------------------
def _ref_conv1x1_bn(x, w, bn, apply_relu):
    scale, shift = bn
    y = jnp.maximum(x, 0.0) if apply_relu else x
    y = jnp.einsum("nhwc,co->nhwo", y, w)
    return y * scale + shift


def _ref_relu_dw3x3(x, w9):
    N, H, W, C = x.shape
    xp = jnp.pad(jnp.maximum(x, 0.0), ((0, 0), (1, 1), (1, 1), (0, 0)))
    w = w9.reshape(3, 3, C)
    acc = jnp.zeros_like(x)
    for dh in range(3):
        for dw in range(3):
            acc = acc + xp[:, dh:dh + H, dw:dw + W, :] * w[dh, dw]
    return acc


def _ref_sepconv(x, p):
    y = _ref_relu_dw3x3(x, p["dw1"])
    y = _ref_conv1x1_bn(y, p["pw1"], p["bn1"], False)
    y = _ref_relu_dw3x3(y, p["dw2"])
    y = _ref_conv1x1_bn(y, p["pw2"], p["bn2"], False)
    return y


def _ref_avgpool_bn(x, bn):
    scale, shift = bn
    N, H, W, C = x.shape
    xp = jnp.pad(x, ((0, 0), (1, 1), (1, 1), (0, 0)))
    onesp = jnp.pad(jnp.ones((H, W), jnp.float32), ((1, 1), (1, 1)))
    acc = jnp.zeros_like(x)
    cnt = jnp.zeros((H, W), jnp.float32)
    for dh in range(3):
        for dw in range(3):
            acc = acc + xp[:, dh:dh + H, dw:dw + W, :]
            cnt = cnt + onesp[dh:dh + H, dw:dw + W]
    return acc / cnt[None, :, :, None] * scale + shift


def reference_forward(s0_nchw, s1_nchw, params):
    s0 = jnp.transpose(s0_nchw, (0, 2, 3, 1))
    s1 = jnp.transpose(s1_nchw, (0, 2, 3, 1))
    s0 = _ref_conv1x1_bn(s0, params["pre0_w"], params["pre0_bn"], True)
    s1 = _ref_conv1x1_bn(s1, params["pre1_w"], params["pre1_bn"], True)
    states = [s0, s1]
    for node_idx, edges in enumerate(GENOTYPE_NORMAL):
        outs = []
        for edge_idx, (op_name, s_idx) in enumerate(edges):
            p = params["dag"][node_idx][edge_idx]
            x = states[s_idx]
            if op_name == "skip_connect":
                outs.append(x)
            elif op_name == "sep_conv_3x3":
                outs.append(_ref_sepconv(x, p))
            elif op_name == "avg_pool_3x3":
                outs.append(_ref_avgpool_bn(x, p["bn"]))
        s_cur = outs[0]
        for o in outs[1:]:
            s_cur = s_cur + o
        states.append(s_cur)
    s_out = jnp.concatenate([states[i] for i in NORMAL_CONCAT], axis=-1)
    return jnp.transpose(s_out, (0, 3, 1, 2))


# -----------------------------------------------------------------------------
if __name__ == "__main__":
    N, C_pp, C_p, C, H, W = 2, 8, 8, 8, 16, 16
    key = jax.random.PRNGKey(0)
    k_s0, k_s1, k_params = jax.random.split(key, 3)
    s0 = jax.random.normal(k_s0, (N, C_pp, H, W), jnp.float32)   # NCHW inputs
    s1 = jax.random.normal(k_s1, (N, C_p, H, W), jnp.float32)
    params = init_params(k_params, C_pp, C_p, C)

    fwd = jax.jit(lambda a, b: augment_cell_forward(a, b, params))
    out = jax.block_until_ready(fwd(s0, s1))

    assert out.shape == (N, C * len(NORMAL_CONCAT), H, W), out.shape

    ref = reference_forward(s0, s1, params)
    if not jnp.allclose(out, ref, atol=1e-4, rtol=1e-4):
        raise SystemExit("MISMATCH: pallas output differs from JAX reference")

    print("KERNEL_OK")
</pallas_src>

<mosaic_0001>
module attributes {stable_mosaic.version = 11 : i64} {
  func.func @_cell_kernel(%arg0: i32, %arg1: memref<16x128xf32, #tpu.memory_space<vmem>>, %arg2: memref<16x128xf32, #tpu.memory_space<vmem>>, %arg3: memref<128x128xf32, #tpu.memory_space<vmem>>, %arg4: memref<128x128xf32, #tpu.memory_space<vmem>>, %arg5: memref<4x9x128xf32, #tpu.memory_space<vmem>>, %arg6: memref<4x128x128xf32, #tpu.memory_space<vmem>>, %arg7: memref<7x128xf32, #tpu.memory_space<vmem>>, %arg8: memref<7x128xf32, #tpu.memory_space<vmem>>, %arg9: memref<16x256xf32, #tpu.memory_space<vmem>>) attributes {dimension_semantics = [#tpu.dimension_semantics<parallel>], iteration_bounds = array<i64: 2>, scalar_prefetch = 0 : i64, scratch_operands = 0 : i64, tpu.core_type = #tpu.core_type<tc>, window_params = [{transform_indices = @transform_0, window_bounds = array<i64: 16, 128>}, {transform_indices = @transform_1, window_bounds = array<i64: 16, 128>}, {pipeline_mode = #tpu.pipeline_mode<synchronous>, transform_indices = @transform_2, window_bounds = array<i64: 128, 128>}, {pipeline_mode = #tpu.pipeline_mode<synchronous>, transform_indices = @transform_3, window_bounds = array<i64: 128, 128>}, {pipeline_mode = #tpu.pipeline_mode<synchronous>, transform_indices = @transform_4, window_bounds = array<i64: 4, 9, 128>}, {pipeline_mode = #tpu.pipeline_mode<synchronous>, transform_indices = @transform_5, window_bounds = array<i64: 4, 128, 128>}, {pipeline_mode = #tpu.pipeline_mode<synchronous>, transform_indices = @transform_6, window_bounds = array<i64: 7, 128>}, {pipeline_mode = #tpu.pipeline_mode<synchronous>, transform_indices = @transform_7, window_bounds = array<i64: 7, 128>}, {transform_indices = @transform_8, window_bounds = array<i64: 16, 256>}]} {
    %0 = tpu.iota {dimensions = array<i32: 0>} : vector<16x128xi32>
    %c16_i32 = arith.constant 16 : i32
    %c0_i32 = arith.constant 0 : i32
    %1 = arith.cmpi eq, %c16_i32, %c0_i32 : i32
    %c1_i32 = arith.constant 1 : i32
    %2 = arith.select %1, %c1_i32, %c16_i32 : i32
    %3 = vector.broadcast %2 : i32 to vector<16x128xi32>
    %4 = arith.remsi %0, %3 : vector<16x128xi32>
    %c0_i32_0 = arith.constant 0 : i32
    %5 = vector.broadcast %c0_i32_0 : i32 to vector<16x128xi32>
    %6 = arith.cmpi ne, %4, %5 : vector<16x128xi32>
    %c0_i32_1 = arith.constant 0 : i32
    %7 = vector.broadcast %c0_i32_1 : i32 to vector<16x128xi32>
    %8 = arith.cmpi slt, %4, %7 : vector<16x128xi32>
    %c0_i32_2 = arith.constant 0 : i32
    %9 = arith.cmpi slt, %2, %c0_i32_2 : i32
    %10 = vector.broadcast %9 : i1 to vector<16x128xi1>
    %11 = vector.broadcast %10 : vector<16x128xi1> to vector<16x128xi1>
    %12 = arith.xori %8, %11 : vector<16x128xi1>
    %13 = arith.andi %12, %6 : vector<16x128xi1>
    %14 = vector.broadcast %2 : i32 to vector<16x128xi32>
    %15 = arith.addi %4, %14 : vector<16x128xi32>
    %16 = arith.select %13, %15, %4 : vector<16x128xi1>, vector<16x128xi32>
    %17 = tpu.iota {dimensions = array<i32: 1>} : vector<16x128xi32>
    %c0_i32_3 = arith.constant 0 : i32
    %18 = vector.broadcast %c0_i32_3 : i32 to vector<16x128xi32>
    %19 = arith.cmpi eq, %16, %18 : vector<16x128xi32>
    %c15_i32 = arith.constant 15 : i32
    %20 = vector.broadcast %c15_i32 : i32 to vector<16x128xi32>
    %21 = arith.cmpi eq, %16, %20 : vector<16x128xi32>
    %c8_i32 = arith.constant 8 : i32
    %22 = vector.broadcast %c8_i32 : i32 to vector<16x128xi32>
    %23 = arith.cmpi slt, %17, %22 : vector<16x128xi32>
    %c120_i32 = arith.constant 120 : i32
    %24 = vector.broadcast %c120_i32 : i32 to vector<16x128xi32>
    %25 = arith.cmpi sge, %17, %24 : vector<16x128xi32>
    %26 = arith.ori %19, %21 : vector<16x128xi1>
    %cst = arith.constant 5.000000e-01 : f32
    %cst_4 = arith.constant 0.333333343 : f32
    %27 = vector.broadcast %cst : f32 to vector<16x128xf32>
    %28 = vector.broadcast %cst_4 : f32 to vector<16x128xf32>
    %29 = arith.select %26, %27, %28 : vector<16x128xi1>, vector<16x128xf32>
    %30 = arith.ori %23, %25 : vector<16x128xi1>
    %cst_5 = arith.constant 5.000000e-01 : f32
    %cst_6 = arith.constant 0.333333343 : f32
    %31 = vector.broadcast %cst_5 : f32 to vector<16x128xf32>
    %32 = vector.broadcast %cst_6 : f32 to vector<16x128xf32>
    %33 = arith.select %30, %31, %32 : vector<16x128xi1>, vector<16x128xf32>
    %34 = arith.mulf %29, %33 : vector<16x128xf32>
    %c0 = arith.constant 0 : index
    %c0_7 = arith.constant 0 : index
    %35 = vector.load %arg1[%c0, %c0_7] : memref<16x128xf32, #tpu.memory_space<vmem>>, vector<16x128xf32>
    %c0_8 = arith.constant 0 : index
    %c0_9 = arith.constant 0 : index
    %36 = vector.load %arg3[%c0_8, %c0_9] : memref<128x128xf32, #tpu.memory_space<vmem>>, vector<128x128xf32>
    %cst_10 = arith.constant 0.000000e+00 : f32
    %37 = vector.broadcast %cst_10 : f32 to vector<16x128xf32>
    %38 = arith.maximumf %35, %37 : vector<16x128xf32>
    %cst_11 = arith.constant dense<0.000000e+00> : vector<16x128xf32>
    %39 = tpu.matmul %38, %36, %cst_11 {dimension_numbers = #tpu.dot_dimension_numbers<[1], [0], [0], [1], [0, 0, 1, 1], [], []>} : vector<16x128xf32>, vector<128x128xf32>, vector<16x128xf32> -> vector<16x128xf32>
    %c0_12 = arith.constant 0 : index
    %c0_13 = arith.constant 0 : index
    %40 = vector.load %arg7[%c0_12, %c0_13] : memref<7x128xf32, #tpu.memory_space<vmem>>, vector<1x128xf32>
    %41 = vector.shape_cast %40 : vector<1x128xf32> to vector<128xf32>
    %42 = vector.shape_cast %41 : vector<128xf32> to vector<1x128xf32>
    %43 = vector.broadcast %42 : vector<1x128xf32> to vector<16x128xf32>
    %44 = arith.mulf %39, %43 : vector<16x128xf32>
    %c0_14 = arith.constant 0 : index
    %c0_15 = arith.constant 0 : index
    %45 = vector.load %arg8[%c0_14, %c0_15] : memref<7x128xf32, #tpu.memory_space<vmem>>, vector<1x128xf32>
    %46 = vector.shape_cast %45 : vector<1x128xf32> to vector<128xf32>
    %47 = vector.shape_cast %46 : vector<128xf32> to vector<1x128xf32>
    %48 = vector.broadcast %47 : vector<1x128xf32> to vector<16x128xf32>
    %49 = arith.addf %44, %48 : vector<16x128xf32>
    %c0_16 = arith.constant 0 : index
    %c0_17 = arith.constant 0 : index
    %50 = vector.load %arg2[%c0_16, %c0_17] : memref<16x128xf32, #tpu.memory_space<vmem>>, vector<16x128xf32>
    %c0_18 = arith.constant 0 : index
    %c0_19 = arith.constant 0 : index
    %51 = vector.load %arg4[%c0_18, %c0_19] : memref<128x128xf32, #tpu.memory_space<vmem>>, vector<128x128xf32>
    %cst_20 = arith.constant 0.000000e+00 : f32
    %52 = vector.broadcast %cst_20 : f32 to vector<16x128xf32>
    %53 = arith.maximumf %50, %52 : vector<16x128xf32>
    %cst_21 = arith.constant dense<0.000000e+00> : vector<16x128xf32>
    %54 = tpu.matmul %53, %51, %cst_21 {dimension_numbers = #tpu.dot_dimension_numbers<[1], [0], [0], [1], [0, 0, 1, 1], [], []>} : vector<16x128xf32>, vector<128x128xf32>, vector<16x128xf32> -> vector<16x128xf32>
    %c1 = arith.constant 1 : index
    %c0_22 = arith.constant 0 : index
    %55 = vector.load %arg7[%c1, %c0_22] : memref<7x128xf32, #tpu.memory_space<vmem>>, vector<1x128xf32>
    %56 = vector.shape_cast %55 : vector<1x128xf32> to vector<128xf32>
    %57 = vector.shape_cast %56 : vector<128xf32> to vector<1x128xf32>
    %58 = vector.broadcast %57 : vector<1x128xf32> to vector<16x128xf32>
    %59 = arith.mulf %54, %58 : vector<16x128xf32>
    %c1_23 = arith.constant 1 : index
    %c0_24 = arith.constant 0 : index
    %60 = vector.load %arg8[%c1_23, %c0_24] : memref<7x128xf32, #tpu.memory_space<vmem>>, vector<1x128xf32>
    %61 = vector.shape_cast %60 : vector<1x128xf32> to vector<128xf32>
    %62 = vector.shape_cast %61 : vector<128xf32> to vector<1x128xf32>
    %63 = vector.broadcast %62 : vector<1x128xf32> to vector<16x128xf32>
    %64 = arith.addf %59, %63 : vector<16x128xf32>
    %cst_25 = arith.constant 0.000000e+00 : f32
    %65 = vector.broadcast %cst_25 : f32 to vector<16x128xf32>
    %66 = arith.maximumf %49, %65 : vector<16x128xf32>
    %c0_26 = arith.constant 0 : index
    %c0_27 = arith.constant 0 : index
    %c0_28 = arith.constant 0 : index
    %67 = vector.load %arg5[%c0_26, %c0_27, %c0_28] : memref<4x9x128xf32, #tpu.memory_space<vmem>>, vector<1x9x128xf32>
    %68 = vector.shape_cast %67 : vector<1x9x128xf32> to vector<9x128xf32>
    %c1_i32_29 = arith.constant 1 : i32
    %69 = tpu.dynamic_rotate %66 by %c1_i32_29 dim 0 : vector<16x128xf32>, i32 -> vector<16x128xf32>
    %cst_30 = arith.constant 0.000000e+00 : f32
    %70 = vector.broadcast %cst_30 : f32 to vector<16x128xf32>
    %71 = arith.select %19, %70, %69 : vector<16x128xi1>, vector<16x128xf32>
    %c15_i32_31 = arith.constant 15 : i32
    %72 = tpu.dynamic_rotate %66 by %c15_i32_31 dim 0 : vector<16x128xf32>, i32 -> vector<16x128xf32>
    %cst_32 = arith.constant 0.000000e+00 : f32
    %73 = vector.broadcast %cst_32 : f32 to vector<16x128xf32>
    %74 = arith.select %21, %73, %72 : vector<16x128xi1>, vector<16x128xf32>
    %75 = vector.extract_strided_slice %68 {offsets = [0, 0], sizes = [1, 128], strides = [1, 1]} : vector<9x128xf32> to vector<1x128xf32>
    %76 = vector.shape_cast %75 : vector<1x128xf32> to vector<128xf32>
    %77 = vector.shape_cast %76 : vector<128xf32> to vector<1x128xf32>
    %78 = vector.broadcast %77 : vector<1x128xf32> to vector<16x128xf32>
    %79 = arith.mulf %71, %78 : vector<16x128xf32>
    %80 = vector.extract_strided_slice %68 {offsets = [3, 0], sizes = [1, 128], strides = [1, 1]} : vector<9x128xf32> to vector<1x128xf32>
    %81 = vector.shape_cast %80 : vector<1x128xf32> to vector<128xf32>
    %82 = vector.shape_cast %81 : vector<128xf32> to vector<1x128xf32>
    %83 = vector.broadcast %82 : vector<1x128xf32> to vector<16x128xf32>
    %84 = arith.mulf %66, %83 : vector<16x128xf32>
    %85 = arith.addf %79, %84 : vector<16x128xf32>
    %86 = vector.extract_strided_slice %68 {offsets = [6, 0], sizes = [1, 128], strides = [1, 1]} : vector<9x128xf32> to vector<1x128xf32>
    %87 = vector.shape_cast %86 : vector<1x128xf32> to vector<128xf32>
    %88 = vector.shape_cast %87 : vector<128xf32> to vector<1x128xf32>
    %89 = vector.broadcast %88 : vector<1x128xf32> to vector<16x128xf32>
    %90 = arith.mulf %74, %89 : vector<16x128xf32>
    %91 = arith.addf %85, %90 : vector<16x128xf32>
    %92 = vector.extract_strided_slice %68 {offsets = [1, 0], sizes = [1, 128], strides = [1, 1]} : vector<9x128xf32> to vector<1x128xf32>
    %93 = vector.shape_cast %92 : vector<1x128xf32> to vector<128xf32>
    %94 = vector.shape_cast %93 : vector<128xf32> to vector<1x128xf32>
    %95 = vector.broadcast %94 : vector<1x128xf32> to vector<16x128xf32>
    %96 = arith.mulf %71, %95 : vector<16x128xf32>
    %97 = vector.extract_strided_slice %68 {offsets = [4, 0], sizes = [1, 128], strides = [1, 1]} : vector<9x128xf32> to vector<1x128xf32>
    %98 = vector.shape_cast %97 : vector<1x128xf32> to vector<128xf32>
    %99 = vector.shape_cast %98 : vector<128xf32> to vector<1x128xf32>
    %100 = vector.broadcast %99 : vector<1x128xf32> to vector<16x128xf32>
    %101 = arith.mulf %66, %100 : vector<16x128xf32>
    %102 = arith.addf %96, %101 : vector<16x128xf32>
    %103 = vector.extract_strided_slice %68 {offsets = [7, 0], sizes = [1, 128], strides = [1, 1]} : vector<9x128xf32> to vector<1x128xf32>
    %104 = vector.shape_cast %103 : vector<1x128xf32> to vector<128xf32>
    %105 = vector.shape_cast %104 : vector<128xf32> to vector<1x128xf32>
    %106 = vector.broadcast %105 : vector<1x128xf32> to vector<16x128xf32>
    %107 = arith.mulf %74, %106 : vector<16x128xf32>
    %108 = arith.addf %102, %107 : vector<16x128xf32>
    %109 = vector.extract_strided_slice %68 {offsets = [2, 0], sizes = [1, 128], strides = [1, 1]} : vector<9x128xf32> to vector<1x128xf32>
    %110 = vector.shape_cast %109 : vector<1x128xf32> to vector<128xf32>
    %111 = vector.shape_cast %110 : vector<128xf32> to vector<1x128xf32>
    %112 = vector.broadcast %111 : vector<1x128xf32> to vector<16x128xf32>
    %113 = arith.mulf %71, %112 : vector<16x128xf32>
    %114 = vector.extract_strided_slice %68 {offsets = [5, 0], sizes = [1, 128], strides = [1, 1]} : vector<9x128xf32> to vector<1x128xf32>
    %115 = vector.shape_cast %114 : vector<1x128xf32> to vector<128xf32>
    %116 = vector.shape_cast %115 : vector<128xf32> to vector<1x128xf32>
    %117 = vector.broadcast %116 : vector<1x128xf32> to vector<16x128xf32>
    %118 = arith.mulf %66, %117 : vector<16x128xf32>
    %119 = arith.addf %113, %118 : vector<16x128xf32>
    %120 = vector.extract_strided_slice %68 {offsets = [8, 0], sizes = [1, 128], strides = [1, 1]} : vector<9x128xf32> to vector<1x128xf32>
    %121 = vector.shape_cast %120 : vector<1x128xf32> to vector<128xf32>
    %122 = vector.shape_cast %121 : vector<128xf32> to vector<1x128xf32>
    %123 = vector.broadcast %122 : vector<1x128xf32> to vector<16x128xf32>
    %124 = arith.mulf %74, %123 : vector<16x128xf32>
    %125 = arith.addf %119, %124 : vector<16x128xf32>
    %c8_i32_33 = arith.constant 8 : i32
    %126 = tpu.dynamic_rotate %91 by %c8_i32_33 dim 1 : vector<16x128xf32>, i32 -> vector<16x128xf32>
    %cst_34 = arith.constant 0.000000e+00 : f32
    %127 = vector.broadcast %cst_34 : f32 to vector<16x128xf32>
    %128 = arith.select %23, %127, %126 : vector<16x128xi1>, vector<16x128xf32>
    %129 = arith.addf %128, %108 : vector<16x128xf32>
    %c120_i32_35 = arith.constant 120 : i32
    %130 = tpu.dynamic_rotate %125 by %c120_i32_35 dim 1 : vector<16x128xf32>, i32 -> vector<16x128xf32>
    %cst_36 = arith.constant 0.000000e+00 : f32
    %131 = vector.broadcast %cst_36 : f32 to vector<16x128xf32>
    %132 = arith.select %25, %131, %130 : vector<16x128xi1>, vector<16x128xf32>
    %133 = arith.addf %129, %132 : vector<16x128xf32>
    %c0_37 = arith.constant 0 : index
    %c0_38 = arith.constant 0 : index
    %c0_39 = arith.constant 0 : index
    %134 = vector.load %arg6[%c0_37, %c0_38, %c0_39] : memref<4x128x128xf32, #tpu.memory_space<vmem>>, vector<1x128x128xf32>
    %135 = vector.shape_cast %134 : vector<1x128x128xf32> to vector<128x128xf32>
    %cst_40 = arith.constant dense<0.000000e+00> : vector<16x128xf32>
    %136 = tpu.matmul %133, %135, %cst_40 {dimension_numbers = #tpu.dot_dimension_numbers<[1], [0], [0], [1], [0, 0, 1, 1], [], []>} : vector<16x128xf32>, vector<128x128xf32>, vector<16x128xf32> -> vector<16x128xf32>
    %c2 = arith.constant 2 : index
    %c0_41 = arith.constant 0 : index
    %137 = vector.load %arg7[%c2, %c0_41] : memref<7x128xf32, #tpu.memory_space<vmem>>, vector<1x128xf32>
    %138 = vector.shape_cast %137 : vector<1x128xf32> to vector<128xf32>
    %139 = vector.shape_cast %138 : vector<128xf32> to vector<1x128xf32>
    %140 = vector.broadcast %139 : vector<1x128xf32> to vector<16x128xf32>
    %141 = arith.mulf %136, %140 : vector<16x128xf32>
    %c2_42 = arith.constant 2 : index
    %c0_43 = arith.constant 0 : index
    %142 = vector.load %arg8[%c2_42, %c0_43] : memref<7x128xf32, #tpu.memory_space<vmem>>, vector<1x128xf32>
    %143 = vector.shape_cast %142 : vector<1x128xf32> to vector<128xf32>
    %144 = vector.shape_cast %143 : vector<128xf32> to vector<1x128xf32>
    %145 = vector.broadcast %144 : vector<1x128xf32> to vector<16x128xf32>
    %146 = arith.addf %141, %145 : vector<16x128xf32>
    %cst_44 = arith.constant 0.000000e+00 : f32
    %147 = vector.broadcast %cst_44 : f32 to vector<16x128xf32>
    %148 = arith.maximumf %146, %147 : vector<16x128xf32>
    %c1_45 = arith.constant 1 : index
    %c0_46 = arith.constant 0 : index
    %c0_47 = arith.constant 0 : index
    %149 = vector.load %arg5[%c1_45, %c0_46, %c0_47] : memref<4x9x128xf32, #tpu.memory_space<vmem>>, vector<1x9x128xf32>
    %150 = vector.shape_cast %149 : vector<1x9x128xf32> to vector<9x128xf32>
    %c1_i32_48 = arith.constant 1 : i32
    %151 = tpu.dynamic_rotate %148 by %c1_i32_48 dim 0 : vector<16x128xf32>, i32 -> vector<16x128xf32>
    %cst_49 = arith.constant 0.000000e+00 : f32
    %152 = vector.broadcast %cst_49 : f32 to vector<16x128xf32>
    %153 = arith.select %19, %152, %151 : vector<16x128xi1>, vector<16x128xf32>
    %c15_i32_50 = arith.constant 15 : i32
    %154 = tpu.dynamic_rotate %148 by %c15_i32_50 dim 0 : vector<16x128xf32>, i32 -> vector<16x128xf32>
    %cst_51 = arith.constant 0.000000e+00 : f32
    %155 = vector.broadcast %cst_51 : f32 to vector<16x128xf32>
    %156 = arith.select %21, %155, %154 : vector<16x128xi1>, vector<16x128xf32>
    %157 = vector.extract_strided_slice %150 {offsets = [0, 0], sizes = [1, 128], strides = [1, 1]} : vector<9x128xf32> to vector<1x128xf32>
    %158 = vector.shape_cast %157 : vector<1x128xf32> to vector<128xf32>
    %159 = vector.shape_cast %158 : vector<128xf32> to vector<1x128xf32>
    %160 = vector.broadcast %159 : vector<1x128xf32> to vector<16x128xf32>
    %161 = arith.mulf %153, %160 : vector<16x128xf32>
    %162 = vector.extract_strided_slice %150 {offsets = [3, 0], sizes = [1, 128], strides = [1, 1]} : vector<9x128xf32> to vector<1x128xf32>
    %163 = vector.shape_cast %162 : vector<1x128xf32> to vector<128xf32>
    %164 = vector.shape_cast %163 : vector<128xf32> to vector<1x128xf32>
    %165 = vector.broadcast %164 : vector<1x128xf32> to vector<16x128xf32>
    %166 = arith.mulf %148, %165 : vector<16x128xf32>
    %167 = arith.addf %161, %166 : vector<16x128xf32>
    %168 = vector.extract_strided_slice %150 {offsets = [6, 0], sizes = [1, 128], strides = [1, 1]} : vector<9x128xf32> to vector<1x128xf32>
    %169 = vector.shape_cast %168 : vector<1x128xf32> to vector<128xf32>
    %170 = vector.shape_cast %169 : vector<128xf32> to vector<1x128xf32>
    %171 = vector.broadcast %170 : vector<1x128xf32> to vector<16x128xf32>
    %172 = arith.mulf %156, %171 : vector<16x128xf32>
    %173 = arith.addf %167, %172 : vector<16x128xf32>
    %174 = vector.extract_strided_slice %150 {offsets = [1, 0], sizes = [1, 128], strides = [1, 1]} : vector<9x128xf32> to vector<1x128xf32>
    %175 = vector.shape_cast %174 : vector<1x128xf32> to vector<128xf32>
    %176 = vector.shape_cast %175 : vector<128xf32> to vector<1x128xf32>
    %177 = vector.broadcast %176 : vector<1x128xf32> to vector<16x128xf32>
    %178 = arith.mulf %153, %177 : vector<16x128xf32>
    %179 = vector.extract_strided_slice %150 {offsets = [4, 0], sizes = [1, 128], strides = [1, 1]} : vector<9x128xf32> to vector<1x128xf32>
    %180 = vector.shape_cast %179 : vector<1x128xf32> to vector<128xf32>
    %181 = vector.shape_cast %180 : vector<128xf32> to vector<1x128xf32>
    %182 = vector.broadcast %181 : vector<1x128xf32> to vector<16x128xf32>
    %183 = arith.mulf %148, %182 : vector<16x128xf32>
    %184 = arith.addf %178, %183 : vector<16x128xf32>
    %185 = vector.extract_strided_slice %150 {offsets = [7, 0], sizes = [1, 128], strides = [1, 1]} : vector<9x128xf32> to vector<1x128xf32>
    %186 = vector.shape_cast %185 : vector<1x128xf32> to vector<128xf32>
    %187 = vector.shape_cast %186 : vector<128xf32> to vector<1x128xf32>
    %188 = vector.broadcast %187 : vector<1x128xf32> to vector<16x128xf32>
    %189 = arith.mulf %156, %188 : vector<16x128xf32>
    %190 = arith.addf %184, %189 : vector<16x128xf32>
    %191 = vector.extract_strided_slice %150 {offsets = [2, 0], sizes = [1, 128], strides = [1, 1]} : vector<9x128xf32> to vector<1x128xf32>
    %192 = vector.shape_cast %191 : vector<1x128xf32> to vector<128xf32>
    %193 = vector.shape_cast %192 : vector<128xf32> to vector<1x128xf32>
    %194 = vector.broadcast %193 : vector<1x128xf32> to vector<16x128xf32>
    %195 = arith.mulf %153, %194 : vector<16x128xf32>
    %196 = vector.extract_strided_slice %150 {offsets = [5, 0], sizes = [1, 128], strides = [1, 1]} : vector<9x128xf32> to vector<1x128xf32>
    %197 = vector.shape_cast %196 : vector<1x128xf32> to vector<128xf32>
    %198 = vector.shape_cast %197 : vector<128xf32> to vector<1x128xf32>
    %199 = vector.broadcast %198 : vector<1x128xf32> to vector<16x128xf32>
    %200 = arith.mulf %148, %199 : vector<16x128xf32>
    %201 = arith.addf %195, %200 : vector<16x128xf32>
    %202 = vector.extract_strided_slice %150 {offsets = [8, 0], sizes = [1, 128], strides = [1, 1]} : vector<9x128xf32> to vector<1x128xf32>
    %203 = vector.shape_cast %202 : vector<1x128xf32> to vector<128xf32>
    %204 = vector.shape_cast %203 : vector<128xf32> to vector<1x128xf32>
    %205 = vector.broadcast %204 : vector<1x128xf32> to vector<16x128xf32>
    %206 = arith.mulf %156, %205 : vector<16x128xf32>
    %207 = arith.addf %201, %206 : vector<16x128xf32>
    %c8_i32_52 = arith.constant 8 : i32
    %208 = tpu.dynamic_rotate %173 by %c8_i32_52 dim 1 : vector<16x128xf32>, i32 -> vector<16x128xf32>
    %cst_53 = arith.constant 0.000000e+00 : f32
    %209 = vector.broadcast %cst_53 : f32 to vector<16x128xf32>
    %210 = arith.select %23, %209, %208 : vector<16x128xi1>, vector<16x128xf32>
    %211 = arith.addf %210, %190 : vector<16x128xf32>
    %c120_i32_54 = arith.constant 120 : i32
    %212 = tpu.dynamic_rotate %207 by %c120_i32_54 dim 1 : vector<16x128xf32>, i32 -> vector<16x128xf32>
    %cst_55 = arith.constant 0.000000e+00 : f32
    %213 = vector.broadcast %cst_55 : f32 to vector<16x128xf32>
    %214 = arith.select %25, %213, %212 : vector<16x128xi1>, vector<16x128xf32>
    %215 = arith.addf %211, %214 : vector<16x128xf32>
    %c1_56 = arith.constant 1 : index
    %c0_57 = arith.constant 0 : index
    %c0_58 = arith.constant 0 : index
    %216 = vector.load %arg6[%c1_56, %c0_57, %c0_58] : memref<4x128x128xf32, #tpu.memory_space<vmem>>, vector<1x128x128xf32>
    %217 = vector.shape_cast %216 : vector<1x128x128xf32> to vector<128x128xf32>
    %cst_59 = arith.constant dense<0.000000e+00> : vector<16x128xf32>
    %218 = tpu.matmul %215, %217, %cst_59 {dimension_numbers = #tpu.dot_dimension_numbers<[1], [0], [0], [1], [0, 0, 1, 1], [], []>} : vector<16x128xf32>, vector<128x128xf32>, vector<16x128xf32> -> vector<16x128xf32>
    %c3 = arith.constant 3 : index
    %c0_60 = arith.constant 0 : index
    %219 = vector.load %arg7[%c3, %c0_60] : memref<7x128xf32, #tpu.memory_space<vmem>>, vector<1x128xf32>
    %220 = vector.shape_cast %219 : vector<1x128xf32> to vector<128xf32>
    %221 = vector.shape_cast %220 : vector<128xf32> to vector<1x128xf32>
    %222 = vector.broadcast %221 : vector<1x128xf32> to vector<16x128xf32>
    %223 = arith.mulf %218, %222 : vector<16x128xf32>
    %c3_61 = arith.constant 3 : index
    %c0_62 = arith.constant 0 : index
    %224 = vector.load %arg8[%c3_61, %c0_62] : memref<7x128xf32, #tpu.memory_space<vmem>>, vector<1x128xf32>
    %225 = vector.shape_cast %224 : vector<1x128xf32> to vector<128xf32>
    %226 = vector.shape_cast %225 : vector<128xf32> to vector<1x128xf32>
    %227 = vector.broadcast %226 : vector<1x128xf32> to vector<16x128xf32>
    %228 = arith.addf %223, %227 : vector<16x128xf32>
    %229 = arith.addf %228, %64 : vector<16x128xf32>
    %c1_i32_63 = arith.constant 1 : i32
    %230 = tpu.dynamic_rotate %49 by %c1_i32_63 dim 0 : vector<16x128xf32>, i32 -> vector<16x128xf32>
    %cst_64 = arith.constant 0.000000e+00 : f32
    %231 = vector.broadcast %cst_64 : f32 to vector<16x128xf32>
    %232 = arith.select %19, %231, %230 : vector<16x128xi1>, vector<16x128xf32>
    %233 = arith.addf %232, %49 : vector<16x128xf32>
    %c15_i32_65 = arith.constant 15 : i32
    %234 = tpu.dynamic_rotate %49 by %c15_i32_65 dim 0 : vector<16x128xf32>, i32 -> vector<16x128xf32>
    %cst_66 = arith.constant 0.000000e+00 : f32
    %235 = vector.broadcast %cst_66 : f32 to vector<16x128xf32>
    %236 = arith.select %21, %235, %234 : vector<16x128xi1>, vector<16x128xf32>
    %237 = arith.addf %233, %236 : vector<16x128xf32>
    %c8_i32_67 = arith.constant 8 : i32
    %238 = tpu.dynamic_rotate %237 by %c8_i32_67 dim 1 : vector<16x128xf32>, i32 -> vector<16x128xf32>
    %cst_68 = arith.constant 0.000000e+00 : f32
    %239 = vector.broadcast %cst_68 : f32 to vector<16x128xf32>
    %240 = arith.select %23, %239, %238 : vector<16x128xi1>, vector<16x128xf32>
    %241 = arith.addf %240, %237 : vector<16x128xf32>
    %c120_i32_69 = arith.constant 120 : i32
    %242 = tpu.dynamic_rotate %237 by %c120_i32_69 dim 1 : vector<16x128xf32>, i32 -> vector<16x128xf32>
    %cst_70 = arith.constant 0.000000e+00 : f32
    %243 = vector.broadcast %cst_70 : f32 to vector<16x128xf32>
    %244 = arith.select %25, %243, %242 : vector<16x128xi1>, vector<16x128xf32>
    %245 = arith.addf %241, %244 : vector<16x128xf32>
    %246 = arith.mulf %245, %34 : vector<16x128xf32>
    %c6 = arith.constant 6 : index
    %c0_71 = arith.constant 0 : index
    %247 = vector.load %arg7[%c6, %c0_71] : memref<7x128xf32, #tpu.memory_space<vmem>>, vector<1x128xf32>
    %248 = vector.shape_cast %247 : vector<1x128xf32> to vector<128xf32>
    %249 = vector.shape_cast %248 : vector<128xf32> to vector<1x128xf32>
    %250 = vector.broadcast %249 : vector<1x128xf32> to vector<16x128xf32>
    %251 = arith.mulf %246, %250 : vector<16x128xf32>
    %c6_72 = arith.constant 6 : index
    %c0_73 = arith.constant 0 : index
    %252 = vector.load %arg8[%c6_72, %c0_73] : memref<7x128xf32, #tpu.memory_space<vmem>>, vector<1x128xf32>
    %253 = vector.shape_cast %252 : vector<1x128xf32> to vector<128xf32>
    %254 = vector.shape_cast %253 : vector<128xf32> to vector<1x128xf32>
    %255 = vector.broadcast %254 : vector<1x128xf32> to vector<16x128xf32>
    %256 = arith.addf %251, %255 : vector<16x128xf32>
    %cst_74 = arith.constant 0.000000e+00 : f32
    %257 = vector.broadcast %cst_74 : f32 to vector<16x128xf32>
    %258 = arith.maximumf %229, %257 : vector<16x128xf32>
    %c2_75 = arith.constant 2 : index
    %c0_76 = arith.constant 0 : index
    %c0_77 = arith.constant 0 : index
    %259 = vector.load %arg5[%c2_75, %c0_76, %c0_77] : memref<4x9x128xf32, #tpu.memory_space<vmem>>, vector<1x9x128xf32>
    %260 = vector.shape_cast %259 : vector<1x9x128xf32> to vector<9x128xf32>
    %c1_i32_78 = arith.constant 1 : i32
    %261 = tpu.dynamic_rotate %258 by %c1_i32_78 dim 0 : vector<16x128xf32>, i32 -> vector<16x128xf32>
    %cst_79 = arith.constant 0.000000e+00 : f32
    %262 = vector.broadcast %cst_79 : f32 to vector<16x128xf32>
    %263 = arith.select %19, %262, %261 : vector<16x128xi1>, vector<16x128xf32>
    %c15_i32_80 = arith.constant 15 : i32
    %264 = tpu.dynamic_rotate %258 by %c15_i32_80 dim 0 : vector<16x128xf32>, i32 -> vector<16x128xf32>
    %cst_81 = arith.constant 0.000000e+00 : f32
    %265 = vector.broadcast %cst_81 : f32 to vector<16x128xf32>
    %266 = arith.select %21, %265, %264 : vector<16x128xi1>, vector<16x128xf32>
    %267 = vector.extract_strided_slice %260 {offsets = [0, 0], sizes = [1, 128], strides = [1, 1]} : vector<9x128xf32> to vector<1x128xf32>
    %268 = vector.shape_cast %267 : vector<1x128xf32> to vector<128xf32>
    %269 = vector.shape_cast %268 : vector<128xf32> to vector<1x128xf32>
    %270 = vector.broadcast %269 : vector<1x128xf32> to vector<16x128xf32>
    %271 = arith.mulf %263, %270 : vector<16x128xf32>
    %272 = vector.extract_strided_slice %260 {offsets = [3, 0], sizes = [1, 128], strides = [1, 1]} : vector<9x128xf32> to vector<1x128xf32>
    %273 = vector.shape_cast %272 : vector<1x128xf32> to vector<128xf32>
    %274 = vector.shape_cast %273 : vector<128xf32> to vector<1x128xf32>
    %275 = vector.broadcast %274 : vector<1x128xf32> to vector<16x128xf32>
    %276 = arith.mulf %258, %275 : vector<16x128xf32>
    %277 = arith.addf %271, %276 : vector<16x128xf32>
    %278 = vector.extract_strided_slice %260 {offsets = [6, 0], sizes = [1, 128], strides = [1, 1]} : vector<9x128xf32> to vector<1x128xf32>
    %279 = vector.shape_cast %278 : vector<1x128xf32> to vector<128xf32>
    %280 = vector.shape_cast %279 : vector<128xf32> to vector<1x128xf32>
    %281 = vector.broadcast %280 : vector<1x128xf32> to vector<16x128xf32>
    %282 = arith.mulf %266, %281 : vector<16x128xf32>
    %283 = arith.addf %277, %282 : vector<16x128xf32>
    %284 = vector.extract_strided_slice %260 {offsets = [1, 0], sizes = [1, 128], strides = [1, 1]} : vector<9x128xf32> to vector<1x128xf32>
    %285 = vector.shape_cast %284 : vector<1x128xf32> to vector<128xf32>
    %286 = vector.shape_cast %285 : vector<128xf32> to vector<1x128xf32>
    %287 = vector.broadcast %286 : vector<1x128xf32> to vector<16x128xf32>
    %288 = arith.mulf %263, %287 : vector<16x128xf32>
    %289 = vector.extract_strided_slice %260 {offsets = [4, 0], sizes = [1, 128], strides = [1, 1]} : vector<9x128xf32> to vector<1x128xf32>
    %290 = vector.shape_cast %289 : vector<1x128xf32> to vector<128xf32>
    %291 = vector.shape_cast %290 : vector<128xf32> to vector<1x128xf32>
    %292 = vector.broadcast %291 : vector<1x128xf32> to vector<16x128xf32>
    %293 = arith.mulf %258, %292 : vector<16x128xf32>
    %294 = arith.addf %288, %293 : vector<16x128xf32>
    %295 = vector.extract_strided_slice %260 {offsets = [7, 0], sizes = [1, 128], strides = [1, 1]} : vector<9x128xf32> to vector<1x128xf32>
    %296 = vector.shape_cast %295 : vector<1x128xf32> to vector<128xf32>
    %297 = vector.shape_cast %296 : vector<128xf32> to vector<1x128xf32>
    %298 = vector.broadcast %297 : vector<1x128xf32> to vector<16x128xf32>
    %299 = arith.mulf %266, %298 : vector<16x128xf32>
    %300 = arith.addf %294, %299 : vector<16x128xf32>
    %301 = vector.extract_strided_slice %260 {offsets = [2, 0], sizes = [1, 128], strides = [1, 1]} : vector<9x128xf32> to vector<1x128xf32>
    %302 = vector.shape_cast %301 : vector<1x128xf32> to vector<128xf32>
    %303 = vector.shape_cast %302 : vector<128xf32> to vector<1x128xf32>
    %304 = vector.broadcast %303 : vector<1x128xf32> to vector<16x128xf32>
    %305 = arith.mulf %263, %304 : vector<16x128xf32>
    %306 = vector.extract_strided_slice %260 {offsets = [5, 0], sizes = [1, 128], strides = [1, 1]} : vector<9x128xf32> to vector<1x128xf32>
    %307 = vector.shape_cast %306 : vector<1x128xf32> to vector<128xf32>
    %308 = vector.shape_cast %307 : vector<128xf32> to vector<1x128xf32>
    %309 = vector.broadcast %308 : vector<1x128xf32> to vector<16x128xf32>
    %310 = arith.mulf %258, %309 : vector<16x128xf32>
    %311 = arith.addf %305, %310 : vector<16x128xf32>
    %312 = vector.extract_strided_slice %260 {offsets = [8, 0], sizes = [1, 128], strides = [1, 1]} : vector<9x128xf32> to vector<1x128xf32>
    %313 = vector.shape_cast %312 : vector<1x128xf32> to vector<128xf32>
    %314 = vector.shape_cast %313 : vector<128xf32> to vector<1x128xf32>
    %315 = vector.broadcast %314 : vector<1x128xf32> to vector<16x128xf32>
    %316 = arith.mulf %266, %315 : vector<16x128xf32>
    %317 = arith.addf %311, %316 : vector<16x128xf32>
    %c8_i32_82 = arith.constant 8 : i32
    %318 = tpu.dynamic_rotate %283 by %c8_i32_82 dim 1 : vector<16x128xf32>, i32 -> vector<16x128xf32>
    %cst_83 = arith.constant 0.000000e+00 : f32
    %319 = vector.broadcast %cst_83 : f32 to vector<16x128xf32>
    %320 = arith.select %23, %319, %318 : vector<16x128xi1>, vector<16x128xf32>
    %321 = arith.addf %320, %300 : vector<16x128xf32>
    %c120_i32_84 = arith.constant 120 : i32
    %322 = tpu.dynamic_rotate %317 by %c120_i32_84 dim 1 : vector<16x128xf32>, i32 -> vector<16x128xf32>
    %cst_85 = arith.constant 0.000000e+00 : f32
    %323 = vector.broadcast %cst_85 : f32 to vector<16x128xf32>
    %324 = arith.select %25, %323, %322 : vector<16x128xi1>, vector<16x128xf32>
    %325 = arith.addf %321, %324 : vector<16x128xf32>
    %c2_86 = arith.constant 2 : index
    %c0_87 = arith.constant 0 : index
    %c0_88 = arith.constant 0 : index
    %326 = vector.load %arg6[%c2_86, %c0_87, %c0_88] : memref<4x128x128xf32, #tpu.memory_space<vmem>>, vector<1x128x128xf32>
    %327 = vector.shape_cast %326 : vector<1x128x128xf32> to vector<128x128xf32>
    %cst_89 = arith.constant dense<0.000000e+00> : vector<16x128xf32>
    %328 = tpu.matmul %325, %327, %cst_89 {dimension_numbers = #tpu.dot_dimension_numbers<[1], [0], [0], [1], [0, 0, 1, 1], [], []>} : vector<16x128xf32>, vector<128x128xf32>, vector<16x128xf32> -> vector<16x128xf32>
    %c4 = arith.constant 4 : index
    %c0_90 = arith.constant 0 : index
    %329 = vector.load %arg7[%c4, %c0_90] : memref<7x128xf32, #tpu.memory_space<vmem>>, vector<1x128xf32>
    %330 = vector.shape_cast %329 : vector<1x128xf32> to vector<128xf32>
    %331 = vector.shape_cast %330 : vector<128xf32> to vector<1x128xf32>
    %332 = vector.broadcast %331 : vector<1x128xf32> to vector<16x128xf32>
    %333 = arith.mulf %328, %332 : vector<16x128xf32>
    %c4_91 = arith.constant 4 : index
    %c0_92 = arith.constant 0 : index
    %334 = vector.load %arg8[%c4_91, %c0_92] : memref<7x128xf32, #tpu.memory_space<vmem>>, vector<1x128xf32>
    %335 = vector.shape_cast %334 : vector<1x128xf32> to vector<128xf32>
    %336 = vector.shape_cast %335 : vector<128xf32> to vector<1x128xf32>
    %337 = vector.broadcast %336 : vector<1x128xf32> to vector<16x128xf32>
    %338 = arith.addf %333, %337 : vector<16x128xf32>
    %cst_93 = arith.constant 0.000000e+00 : f32
    %339 = vector.broadcast %cst_93 : f32 to vector<16x128xf32>
    %340 = arith.maximumf %338, %339 : vector<16x128xf32>
    %c3_94 = arith.constant 3 : index
    %c0_95 = arith.constant 0 : index
    %c0_96 = arith.constant 0 : index
    %341 = vector.load %arg5[%c3_94, %c0_95, %c0_96] : memref<4x9x128xf32, #tpu.memory_space<vmem>>, vector<1x9x128xf32>
    %342 = vector.shape_cast %341 : vector<1x9x128xf32> to vector<9x128xf32>
    %c1_i32_97 = arith.constant 1 : i32
    %343 = tpu.dynamic_rotate %340 by %c1_i32_97 dim 0 : vector<16x128xf32>, i32 -> vector<16x128xf32>
    %cst_98 = arith.constant 0.000000e+00 : f32
    %344 = vector.broadcast %cst_98 : f32 to vector<16x128xf32>
    %345 = arith.select %19, %344, %343 : vector<16x128xi1>, vector<16x128xf32>
    %c15_i32_99 = arith.constant 15 : i32
    %346 = tpu.dynamic_rotate %340 by %c15_i32_99 dim 0 : vector<16x128xf32>, i32 -> vector<16x128xf32>
    %cst_100 = arith.constant 0.000000e+00 : f32
    %347 = vector.broadcast %cst_100 : f32 to vector<16x128xf32>
    %348 = arith.select %21, %347, %346 : vector<16x128xi1>, vector<16x128xf32>
    %349 = vector.extract_strided_slice %342 {offsets = [0, 0], sizes = [1, 128], strides = [1, 1]} : vector<9x128xf32> to vector<1x128xf32>
    %350 = vector.shape_cast %349 : vector<1x128xf32> to vector<128xf32>
    %351 = vector.shape_cast %350 : vector<128xf32> to vector<1x128xf32>
    %352 = vector.broadcast %351 : vector<1x128xf32> to vector<16x128xf32>
    %353 = arith.mulf %345, %352 : vector<16x128xf32>
    %354 = vector.extract_strided_slice %342 {offsets = [3, 0], sizes = [1, 128], strides = [1, 1]} : vector<9x128xf32> to vector<1x128xf32>
    %355 = vector.shape_cast %354 : vector<1x128xf32> to vector<128xf32>
    %356 = vector.shape_cast %355 : vector<128xf32> to vector<1x128xf32>
    %357 = vector.broadcast %356 : vector<1x128xf32> to vector<16x128xf32>
    %358 = arith.mulf %340, %357 : vector<16x128xf32>
    %359 = arith.addf %353, %358 : vector<16x128xf32>
    %360 = vector.extract_strided_slice %342 {offsets = [6, 0], sizes = [1, 128], strides = [1, 1]} : vector<9x128xf32> to vector<1x128xf32>
    %361 = vector.shape_cast %360 : vector<1x128xf32> to vector<128xf32>
    %362 = vector.shape_cast %361 : vector<128xf32> to vector<1x128xf32>
    %363 = vector.broadcast %362 : vector<1x128xf32> to vector<16x128xf32>
    %364 = arith.mulf %348, %363 : vector<16x128xf32>
    %365 = arith.addf %359, %364 : vector<16x128xf32>
    %366 = vector.extract_strided_slice %342 {offsets = [1, 0], sizes = [1, 128], strides = [1, 1]} : vector<9x128xf32> to vector<1x128xf32>
    %367 = vector.shape_cast %366 : vector<1x128xf32> to vector<128xf32>
    %368 = vector.shape_cast %367 : vector<128xf32> to vector<1x128xf32>
    %369 = vector.broadcast %368 : vector<1x128xf32> to vector<16x128xf32>
    %370 = arith.mulf %345, %369 : vector<16x128xf32>
    %371 = vector.extract_strided_slice %342 {offsets = [4, 0], sizes = [1, 128], strides = [1, 1]} : vector<9x128xf32> to vector<1x128xf32>
    %372 = vector.shape_cast %371 : vector<1x128xf32> to vector<128xf32>
    %373 = vector.shape_cast %372 : vector<128xf32> to vector<1x128xf32>
    %374 = vector.broadcast %373 : vector<1x128xf32> to vector<16x128xf32>
    %375 = arith.mulf %340, %374 : vector<16x128xf32>
    %376 = arith.addf %370, %375 : vector<16x128xf32>
    %377 = vector.extract_strided_slice %342 {offsets = [7, 0], sizes = [1, 128], strides = [1, 1]} : vector<9x128xf32> to vector<1x128xf32>
    %378 = vector.shape_cast %377 : vector<1x128xf32> to vector<128xf32>
    %379 = vector.shape_cast %378 : vector<128xf32> to vector<1x128xf32>
    %380 = vector.broadcast %379 : vector<1x128xf32> to vector<16x128xf32>
    %381 = arith.mulf %348, %380 : vector<16x128xf32>
    %382 = arith.addf %376, %381 : vector<16x128xf32>
    %383 = vector.extract_strided_slice %342 {offsets = [2, 0], sizes = [1, 128], strides = [1, 1]} : vector<9x128xf32> to vector<1x128xf32>
    %384 = vector.shape_cast %383 : vector<1x128xf32> to vector<128xf32>
    %385 = vector.shape_cast %384 : vector<128xf32> to vector<1x128xf32>
    %386 = vector.broadcast %385 : vector<1x128xf32> to vector<16x128xf32>
    %387 = arith.mulf %345, %386 : vector<16x128xf32>
    %388 = vector.extract_strided_slice %342 {offsets = [5, 0], sizes = [1, 128], strides = [1, 1]} : vector<9x128xf32> to vector<1x128xf32>
    %389 = vector.shape_cast %388 : vector<1x128xf32> to vector<128xf32>
    %390 = vector.shape_cast %389 : vector<128xf32> to vector<1x128xf32>
    %391 = vector.broadcast %390 : vector<1x128xf32> to vector<16x128xf32>
    %392 = arith.mulf %340, %391 : vector<16x128xf32>
    %393 = arith.addf %387, %392 : vector<16x128xf32>
    %394 = vector.extract_strided_slice %342 {offsets = [8, 0], sizes = [1, 128], strides = [1, 1]} : vector<9x128xf32> to vector<1x128xf32>
    %395 = vector.shape_cast %394 : vector<1x128xf32> to vector<128xf32>
    %396 = vector.shape_cast %395 : vector<128xf32> to vector<1x128xf32>
    %397 = vector.broadcast %396 : vector<1x128xf32> to vector<16x128xf32>
    %398 = arith.mulf %348, %397 : vector<16x128xf32>
    %399 = arith.addf %393, %398 : vector<16x128xf32>
    %c8_i32_101 = arith.constant 8 : i32
    %400 = tpu.dynamic_rotate %365 by %c8_i32_101 dim 1 : vector<16x128xf32>, i32 -> vector<16x128xf32>
    %cst_102 = arith.constant 0.000000e+00 : f32
    %401 = vector.broadcast %cst_102 : f32 to vector<16x128xf32>
    %402 = arith.select %23, %401, %400 : vector<16x128xi1>, vector<16x128xf32>
    %403 = arith.addf %402, %382 : vector<16x128xf32>
    %c120_i32_103 = arith.constant 120 : i32
    %404 = tpu.dynamic_rotate %399 by %c120_i32_103 dim 1 : vector<16x128xf32>, i32 -> vector<16x128xf32>
    %cst_104 = arith.constant 0.000000e+00 : f32
    %405 = vector.broadcast %cst_104 : f32 to vector<16x128xf32>
    %406 = arith.select %25, %405, %404 : vector<16x128xi1>, vector<16x128xf32>
    %407 = arith.addf %403, %406 : vector<16x128xf32>
    %c3_105 = arith.constant 3 : index
    %c0_106 = arith.constant 0 : index
    %c0_107 = arith.constant 0 : index
    %408 = vector.load %arg6[%c3_105, %c0_106, %c0_107] : memref<4x128x128xf32, #tpu.memory_space<vmem>>, vector<1x128x128xf32>
    %409 = vector.shape_cast %408 : vector<1x128x128xf32> to vector<128x128xf32>
    %cst_108 = arith.constant dense<0.000000e+00> : vector<16x128xf32>
    %410 = tpu.matmul %407, %409, %cst_108 {dimension_numbers = #tpu.dot_dimension_numbers<[1], [0], [0], [1], [0, 0, 1, 1], [], []>} : vector<16x128xf32>, vector<128x128xf32>, vector<16x128xf32> -> vector<16x128xf32>
    %c5 = arith.constant 5 : index
    %c0_109 = arith.constant 0 : index
    %411 = vector.load %arg7[%c5, %c0_109] : memref<7x128xf32, #tpu.memory_space<vmem>>, vector<1x128xf32>
    %412 = vector.shape_cast %411 : vector<1x128xf32> to vector<128xf32>
    %413 = vector.shape_cast %412 : vector<128xf32> to vector<1x128xf32>
    %414 = vector.broadcast %413 : vector<1x128xf32> to vector<16x128xf32>
    %415 = arith.mulf %410, %414 : vector<16x128xf32>
    %c5_110 = arith.constant 5 : index
    %c0_111 = arith.constant 0 : index
    %416 = vector.load %arg8[%c5_110, %c0_111] : memref<7x128xf32, #tpu.memory_space<vmem>>, vector<1x128xf32>
    %417 = vector.shape_cast %416 : vector<1x128xf32> to vector<128xf32>
    %418 = vector.shape_cast %417 : vector<128xf32> to vector<1x128xf32>
    %419 = vector.broadcast %418 : vector<1x128xf32> to vector<16x128xf32>
    %420 = arith.addf %415, %419 : vector<16x128xf32>
    %421 = arith.addf %256, %420 : vector<16x128xf32>
    %c0_112 = arith.constant 0 : index
    %c0_113 = arith.constant 0 : index
    %422 = vector.load %arg9[%c0_112, %c0_113] : memref<16x256xf32, #tpu.memory_space<vmem>>, vector<16x128xf32>
    tpu.vector_store %arg9[%c0_112, %c0_113], %229 {strides = array<i32>} : memref<16x256xf32, #tpu.memory_space<vmem>>, vector<16x128xf32>,
    %c0_114 = arith.constant 0 : index
    %c128 = arith.constant 128 : index
    %423 = vector.load %arg9[%c0_114, %c128] : memref<16x256xf32, #tpu.memory_space<vmem>>, vector<16x128xf32>
    tpu.vector_store %arg9[%c0_114, %c128], %421 {strides = array<i32>} : memref<16x256xf32, #tpu.memory_space<vmem>>, vector<16x128xf32>,
    return
  }
  func.func @transform_0(%arg0: i32) -> (i32, i32) {
    %c0_i32 = arith.constant 0 : i32
    %c0_i32_0 = arith.constant 0 : i32
    return %arg0, %c0_i32 : i32, i32
  }
  func.func @transform_1(%arg0: i32) -> (i32, i32) {
    %c0_i32 = arith.constant 0 : i32
    %c0_i32_0 = arith.constant 0 : i32
    return %arg0, %c0_i32 : i32, i32
  }
  func.func @transform_2(%arg0: i32) -> (i32, i32) {
    %c0_i32 = arith.constant 0 : i32
    %c0_i32_0 = arith.constant 0 : i32
    %c0_i32_1 = arith.constant 0 : i32
    return %c0_i32, %c0_i32_0 : i32, i32
  }
  func.func @transform_3(%arg0: i32) -> (i32, i32) {
    %c0_i32 = arith.constant 0 : i32
    %c0_i32_0 = arith.constant 0 : i32
    %c0_i32_1 = arith.constant 0 : i32
    return %c0_i32, %c0_i32_0 : i32, i32
  }
  func.func @transform_4(%arg0: i32) -> (i32, i32, i32) {
    %c0_i32 = arith.constant 0 : i32
    %c0_i32_0 = arith.constant 0 : i32
    %c0_i32_1 = arith.constant 0 : i32
    %c0_i32_2 = arith.constant 0 : i32
    return %c0_i32, %c0_i32_0, %c0_i32_1 : i32, i32, i32
  }
  func.func @transform_5(%arg0: i32) -> (i32, i32, i32) {
    %c0_i32 = arith.constant 0 : i32
    %c0_i32_0 = arith.constant 0 : i32
    %c0_i32_1 = arith.constant 0 : i32
    %c0_i32_2 = arith.constant 0 : i32
    return %c0_i32, %c0_i32_0, %c0_i32_1 : i32, i32, i32
  }
  func.func @transform_6(%arg0: i32) -> (i32, i32) {
    %c0_i32 = arith.constant 0 : i32
    %c0_i32_0 = arith.constant 0 : i32
    %c0_i32_1 = arith.constant 0 : i32
    return %c0_i32, %c0_i32_0 : i32, i32
  }
  func.func @transform_7(%arg0: i32) -> (i32, i32) {
    %c0_i32 = arith.constant 0 : i32
    %c0_i32_0 = arith.constant 0 : i32
    %c0_i32_1 = arith.constant 0 : i32
    return %c0_i32, %c0_i32_0 : i32, i32
  }
  func.func @transform_8(%arg0: i32) -> (i32, i32) {
    %c0_i32 = arith.constant 0 : i32
    %c0_i32_0 = arith.constant 0 : i32
    return %arg0, %c0_i32 : i32, i32
  }
}

</mosaic_0001>

<llo_original>
// kernel: tile.90
$region0: #{tile.90}
  #allocation0 [shape = 's32[1]{0}', space=sflag, size = 0x4, scoped, tag = 'scoped memory for tile.90']
  %s0 = inlined_call_operand.vmem [shape: f32[8], index: 0, kind: input, shape index: {}]
  %s1 = inlined_call_operand.vmem [shape: f32[16,8], index: 1, kind: output, shape index: {}]
  // Predicated region
  $region2: #{tile.90} parent=0 // pred_check
    _
  $region3: #{tile.90} parent=0 // pred_check_branch
    %3 = sbr.rel (0) target = $region5
  $region4: #{tile.90} parent=0 // pred_region
    _
  $region5: #{tile.90} parent=0 // pred_fallthru
    _
  %v4 = vld [vmem:[%s0] ss:$0 sm:$0xff]
  %5 = vst [vmem:[%s1] sm:$0xff] %v4
  %s6 = scalar_lea.vmem %s1, 8
  %7 = vst [vmem:[%s6] sm:$0xff] %v4

// kernel: tile.109
$region0: #{tile.109}
  %s0 = inlined_call_operand.vmem [shape: f32[16,8], index: 0, kind: input, shape index: {}]
  %s1 = inlined_call_operand.vmem [shape: f32[1,128], index: 1, kind: output, shape index: {}]
  $region1: #{tile.109} parent=0
    #allocation0 [shape = 'u8[4096]{0}', space=vmem, size = 0x1000, scoped, tag = 'scoped mem for output reshape']
    %v2 = vld [vmem:[%s0] sm:$0x1]
    %vm3 = vcmask 64512
    %4 = vst.msk [vmem:[#allocation0] sm:$0x1] %vm3, %v2
    %s5 = scalar_lea.vmem %s0, 15
    %v6 = vld [vmem:[%s5] sm:$0x1]
    %7 = vrot.lane.b32.xlu0 %v6, 120
    %v8 = vpop.permute.xlu0 %7
    %vm9 = vcmask 1048512
    %10 = vst.msk [vmem:[#allocation0] sm:$0x1] %vm9, %v8
    %s11 = scalar_lea.vmem %s0, 14
    %v12 = vld [vmem:[%s11] sm:$0x1]
    %13 = vrot.lane.b32.xlu0 %v12, 112
    %v14 = vpop.permute.xlu0 %13
    %vm15 = vcmask 982912
    %16 = vst.msk [vmem:[#allocation0] sm:$0x1] %vm15, %v14
    %s17 = scalar_lea.vmem %s0, 13
    %v18 = vld [vmem:[%s17] sm:$0x1]
    %19 = vrot.lane.b32.xlu0 %v18, 104
    %v20 = vpop.permute.xlu0 %19
    %vm21 = vcmask 917312
    %22 = vst.msk [vmem:[#allocation0] sm:$0x1] %vm21, %v20
    %s23 = scalar_lea.vmem %s0, 12
    %v24 = vld [vmem:[%s23] sm:$0x1]
    %25 = vrot.lane.b32.xlu0 %v24, 96
    %v26 = vpop.permute.xlu0 %25
    %vm27 = vcmask 851712
    %28 = vst.msk [vmem:[#allocation0] sm:$0x1] %vm27, %v26
    %s29 = scalar_lea.vmem %s0, 11
    %v30 = vld [vmem:[%s29] sm:$0x1]
    %31 = vrot.lane.b32.xlu0 %v30, 88
    %v32 = vpop.permute.xlu0 %31
    %vm33 = vcmask 786112
    %34 = vst.msk [vmem:[#allocation0] sm:$0x1] %vm33, %v32
    %s35 = scalar_lea.vmem %s0, 10
    %v36 = vld [vmem:[%s35] sm:$0x1]
    %37 = vrot.lane.b32.xlu0 %v36, 80
    %v38 = vpop.permute.xlu0 %37
    %vm39 = vcmask 720512
    %40 = vst.msk [vmem:[#allocation0] sm:$0x1] %vm39, %v38
    %s41 = scalar_lea.vmem %s0, 9
    %v42 = vld [vmem:[%s41] sm:$0x1]
    %43 = vrot.lane.b32.xlu0 %v42, 72
    %v44 = vpop.permute.xlu0 %43
    %vm45 = vcmask 654912
    %46 = vst.msk [vmem:[#allocation0] sm:$0x1] %vm45, %v44
    %s47 = scalar_lea.vmem %s0, 8
    %v48 = vld [vmem:[%s47] sm:$0x1]
    %49 = vrot.lane.b32.xlu0 %v48, 64
    %v50 = vpop.permute.xlu0 %49
    %vm51 = vcmask 589312
    %52 = vst.msk [vmem:[#allocation0] sm:$0x1] %vm51, %v50
    %s53 = scalar_lea.vmem %s0, 7
    %v54 = vld [vmem:[%s53] sm:$0x1]
    %55 = vrot.lane.b32.xlu0 %v54, 56
    %v56 = vpop.permute.xlu0 %55
    %vm57 = vcmask 523712
    %58 = vst.msk [vmem:[#allocation0] sm:$0x1] %vm57, %v56
    %s59 = scalar_lea.vmem %s0, 6
    %v60 = vld [vmem:[%s59] sm:$0x1]
    %61 = vrot.lane.b32.xlu0 %v60, 48
    %v62 = vpop.permute.xlu0 %61
    %vm63 = vcmask 458112
    %64 = vst.msk [vmem:[#allocation0] sm:$0x1] %vm63, %v62
    %s65 = scalar_lea.vmem %s0, 5
    %v66 = vld [vmem:[%s65] sm:$0x1]
    %67 = vrot.lane.b32.xlu0 %v66, 40
    %v68 = vpop.permute.xlu0 %67
    %vm69 = vcmask 392512
    %70 = vst.msk [vmem:[#allocation0] sm:$0x1] %vm69, %v68
    %s71 = scalar_lea.vmem %s0, 4
    %v72 = vld [vmem:[%s71] sm:$0x1]
    %73 = vrot.lane.b32.xlu0 %v72, 32
    %v74 = vpop.permute.xlu0 %73
    %vm75 = vcmask 326912
    %76 = vst.msk [vmem:[#allocation0] sm:$0x1] %vm75, %v74
    %s77 = scalar_lea.vmem %s0, 3
    %v78 = vld [vmem:[%s77] sm:$0x1]
    %79 = vrot.lane.b32.xlu0 %v78, 24
    %v80 = vpop.permute.xlu0 %79
    %vm81 = vcmask 261312
    %82 = vst.msk [vmem:[#allocation0] sm:$0x1] %vm81, %v80
    %s83 = scalar_lea.vmem %s0, 2
    %v84 = vld [vmem:[%s83] sm:$0x1]
    %85 = vrot.lane.b32.xlu0 %v84, 16
    %v86 = vpop.permute.xlu0 %85
    %vm87 = vcmask 195712
    %88 = vst.msk [vmem:[#allocation0] sm:$0x1] %vm87, %v86
    %s89 = scalar_lea.vmem %s0, 1
    %v90 = vld [vmem:[%s89] sm:$0x1]
    %91 = vrot.lane.b32.xlu0 %v90, 8
    %v92 = vpop.permute.xlu0 %91
    %vm93 = vcmask 130112
    %94 = vst.msk [vmem:[#allocation0] sm:$0x1] %vm93, %v92
    %s96 = sshllo.u32 0, 1
    %v98 = vld [vmem:[#allocation0] sm:%s96]
    %s99 = sshllo.u32 0, 1
    %100 = vst [vmem:[%s1] sm:%s99] %v98

// kernel: _lambda_.1
$region0: #{_lambda_.1}
  #allocation0 [shape = 'u32[]', space=smem, size = 0x4, offset = 0x4, fixed_abs, tag = 'smem constant byte address 0x4 - core index']
  #allocation1 [shape = 'u32[144,128]{1,0:T(1,128)}', space=vmem, size = 0x12000, scoped, tag = 'internal scratch']
  %s0 = inlined_call_operand.vmem [shape: f32[32,128], index: 0, kind: input, shape index: {}]
  %s1 = inlined_call_operand.vmem [shape: f32[32,128], index: 1, kind: input, shape index: {}]
  %s2 = inlined_call_operand.vmem [shape: f32[128,128], index: 2, kind: input, shape index: {}]
  %s3 = inlined_call_operand.vmem [shape: f32[128,128], index: 3, kind: input, shape index: {}]
  %s4 = inlined_call_operand.vmem [shape: f32[4,9,128], index: 4, kind: input, shape index: {}]
  %s5 = inlined_call_operand.vmem [shape: f32[4,128,128], index: 5, kind: input, shape index: {}]
  %s6 = inlined_call_operand.vmem [shape: f32[7,128], index: 6, kind: input, shape index: {}]
  %s7 = inlined_call_operand.vmem [shape: f32[7,128], index: 7, kind: input, shape index: {}]
  %s8 = inlined_call_operand.vmem [shape: f32[32,256], index: 8, kind: output, shape index: {}]
  %s9 = sld [smem:[#allocation0]]
  $region65: #{_lambda_.1} parent=0
    _
  %s11 = ssub.s32 1, %s9
  %s12 = scalar_select 0, %s11, %s9
  loop: start=0, step=1, limit=4
  $region2: #{_lambda_.1} parent=0 // loop_pre_header
    _
  $region3: #{_lambda_.1} parent=0 // loop_header
    %s14 = sphi 0, %s18
    %p15 = scmp.ge.s32.totalorder %s14, 4
    %s24 = sphi 0, %s26
    %s27 = sphi 0, %s24
    %s28 = sphi 0, %s27
    %s44 = sphi 0, %s28
    %s50 = sphi 0, %s52
    %s53 = sphi 0, %s50
    %s54 = sphi 0, %s53
    %s70 = sphi 0, %s54
    %s74 = sphi 0, %s74
    %s76 = sphi 0, %s74
    %s77 = sphi 0, %s76
    %s91 = sphi 0, %s77
    %s95 = sphi 0, %s95
    %s97 = sphi 0, %s95
    %s98 = sphi 0, %s97
    %s112 = sphi 0, %s98
    %s116 = sphi 0, %s116
    %s118 = sphi 0, %s116
    %s119 = sphi 0, %s118
    %s133 = sphi 0, %s119
    %s137 = sphi 0, %s137
    %s139 = sphi 0, %s137
    %s140 = sphi 0, %s139
    %s154 = sphi 0, %s140
    %s158 = sphi 0, %s158
    %s160 = sphi 0, %s158
    %s161 = sphi 0, %s160
    %s175 = sphi 0, %s161
    %s179 = sphi 0, %s179
    %s181 = sphi 0, %s179
    %s182 = sphi 0, %s181
    %s196 = sphi 0, %s182
    %s202 = sphi 0, %s204
    %s205 = sphi 0, %s202
    %s206 = sphi 0, %s205
    %s222 = sphi 0, %s206
  $region4: #{_lambda_.1} parent=0 // loop_header_branch
    %17 = sbr.rel (%p15) target = $region8
  $region5: #{_lambda_.1} parent=0 // loop_body
    %s19 = ssub.s32 %s14, 1
    %s20 = ssub.s32 %s14, 2
    %s21 = sadd.s32 %s14, 1
    %s22 = ssub.s32 %s14, %s21
    %p23 = scmp.eq.s32.totalorder %s22, 0
    %s25 = sadd.s32 %s24, 1
    %s26 = scalar_select %p23, %s24, %s25
    %p29 = pneg %p23
    %p30 = scmp.eq.s32.totalorder %s14, 1
    %p31 = por %p29, %p30
    %p32 = scmp.ne.s32.totalorder %s24, %s27
    %p33 = scmp.eq.s32.totalorder %s14, 0
    %p34 = por %p32, %p33
    %p35 = scmp.ne.s32.totalorder %s24, %s27
    %p36 = scmp.eq.s32.totalorder %s19, 1
    %p37 = por %p35, %p36
    %p38 = scmp.ne.s32.totalorder %s27, %s28
    %p39 = scmp.eq.s32.totalorder %s19, 0
    %p40 = por %p38, %p39
    %p41 = scmp.ne.s32.totalorder %s27, %s28
    %p42 = scmp.eq.s32.totalorder %s20, 1
    %p43 = por %p41, %p42
    %p45 = scmp.ne.s32.totalorder %s28, %s44
    %p46 = scmp.eq.s32.totalorder %s20, 0
    %p47 = por %p45, %p46
    %s48 = ssub.s32 %s14, %s21
    %p49 = scmp.eq.s32.totalorder %s48, 0
    %s51 = sadd.s32 %s50, 1
    %s52 = scalar_select %p49, %s50, %s51
    %p55 = pneg %p49
    %p56 = scmp.eq.s32.totalorder %s14, 1
    %p57 = por %p55, %p56
    %p58 = scmp.ne.s32.totalorder %s50, %s53
    %p59 = scmp.eq.s32.totalorder %s14, 0
    %p60 = por %p58, %p59
    %p61 = scmp.ne.s32.totalorder %s50, %s53
    %p62 = scmp.eq.s32.totalorder %s19, 1
    %p63 = por %p61, %p62
    %p64 = scmp.ne.s32.totalorder %s53, %s54
    %p65 = scmp.eq.s32.totalorder %s19, 0
    %p66 = por %p64, %p65
    %p67 = scmp.ne.s32.totalorder %s53, %s54
    %p68 = scmp.eq.s32.totalorder %s20, 1
    %p69 = por %p67, %p68
    %p71 = scmp.ne.s32.totalorder %s54, %s70
    %p72 = scmp.eq.s32.totalorder %s20, 0
    %p73 = por %p71, %p72
    %s75 = sadd.s32 %s74, 1
    %p78 = scmp.eq.s32.totalorder %s14, 1
    %p79 = scmp.ne.s32.totalorder %s74, %s76
    %p80 = scmp.eq.s32.totalorder %s14, 0
    %p81 = por %p79, %p80
    %p82 = scmp.ne.s32.totalorder %s74, %s76
    %p83 = scmp.eq.s32.totalorder %s19, 1
    %p84 = por %p82, %p83
    %p85 = scmp.ne.s32.totalorder %s76, %s77
    %p86 = scmp.eq.s32.totalorder %s19, 0
    %p87 = por %p85, %p86
    %p88 = scmp.ne.s32.totalorder %s76, %s77
    %p89 = scmp.eq.s32.totalorder %s20, 1
    %p90 = por %p88, %p89
    %p92 = scmp.ne.s32.totalorder %s77, %s91
    %p93 = scmp.eq.s32.totalorder %s20, 0
    %p94 = por %p92, %p93
    %s96 = sadd.s32 %s95, 1
    %p99 = scmp.eq.s32.totalorder %s14, 1
    %p100 = scmp.ne.s32.totalorder %s95, %s97
    %p101 = scmp.eq.s32.totalorder %s14, 0
    %p102 = por %p100, %p101
    %p103 = scmp.ne.s32.totalorder %s95, %s97
    %p104 = scmp.eq.s32.totalorder %s19, 1
    %p105 = por %p103, %p104
    %p106 = scmp.ne.s32.totalorder %s97, %s98
    %p107 = scmp.eq.s32.totalorder %s19, 0
    %p108 = por %p106, %p107
    %p109 = scmp.ne.s32.totalorder %s97, %s98
    %p110 = scmp.eq.s32.totalorder %s20, 1
    %p111 = por %p109, %p110
    %p113 = scmp.ne.s32.totalorder %s98, %s112
    %p114 = scmp.eq.s32.totalorder %s20, 0
    %p115 = por %p113, %p114
    %s117 = sadd.s32 %s116, 1
    %p120 = scmp.eq.s32.totalorder %s14, 1
    %p121 = scmp.ne.s32.totalorder %s116, %s118
    %p122 = scmp.eq.s32.totalorder %s14, 0
    %p123 = por %p121, %p122
    %p124 = scmp.ne.s32.totalorder %s116, %s118
    %p125 = scmp.eq.s32.totalorder %s19, 1
    %p126 = por %p124, %p125
    %p127 = scmp.ne.s32.totalorder %s118, %s119
    %p128 = scmp.eq.s32.totalorder %s19, 0
    %p129 = por %p127, %p128
    %p130 = scmp.ne.s32.totalorder %s118, %s119
    %p131 = scmp.eq.s32.totalorder %s20, 1
    %p132 = por %p130, %p131
    %p134 = scmp.ne.s32.totalorder %s119, %s133
    %p135 = scmp.eq.s32.totalorder %s20, 0
    %p136 = por %p134, %p135
    %s138 = sadd.s32 %s137, 1
    %p141 = scmp.eq.s32.totalorder %s14, 1
    %p142 = scmp.ne.s32.totalorder %s137, %s139
    %p143 = scmp.eq.s32.totalorder %s14, 0
    %p144 = por %p142, %p143
    %p145 = scmp.ne.s32.totalorder %s137, %s139
    %p146 = scmp.eq.s32.totalorder %s19, 1
    %p147 = por %p145, %p146
    %p148 = scmp.ne.s32.totalorder %s139, %s140
    %p149 = scmp.eq.s32.totalorder %s19, 0
    %p150 = por %p148, %p149
    %p151 = scmp.ne.s32.totalorder %s139, %s140
    %p152 = scmp.eq.s32.totalorder %s20, 1
    %p153 = por %p151, %p152
    %p155 = scmp.ne.s32.totalorder %s140, %s154
    %p156 = scmp.eq.s32.totalorder %s20, 0
    %p157 = por %p155, %p156
    %s159 = sadd.s32 %s158, 1
    %p162 = scmp.eq.s32.totalorder %s14, 1
    %p163 = scmp.ne.s32.totalorder %s158, %s160
    %p164 = scmp.eq.s32.totalorder %s14, 0
    %p165 = por %p163, %p164
    %p166 = scmp.ne.s32.totalorder %s158, %s160
    %p167 = scmp.eq.s32.totalorder %s19, 1
    %p168 = por %p166, %p167
    %p169 = scmp.ne.s32.totalorder %s160, %s161
    %p170 = scmp.eq.s32.totalorder %s19, 0
    %p171 = por %p169, %p170
    %p172 = scmp.ne.s32.totalorder %s160, %s161
    %p173 = scmp.eq.s32.totalorder %s20, 1
    %p174 = por %p172, %p173
    %p176 = scmp.ne.s32.totalorder %s161, %s175
    %p177 = scmp.eq.s32.totalorder %s20, 0
    %p178 = por %p176, %p177
    %s180 = sadd.s32 %s179, 1
    %p183 = scmp.eq.s32.totalorder %s14, 1
    %p184 = scmp.ne.s32.totalorder %s179, %s181
    %p185 = scmp.eq.s32.totalorder %s14, 0
    %p186 = por %p184, %p185
    %p187 = scmp.ne.s32.totalorder %s179, %s181
    %p188 = scmp.eq.s32.totalorder %s19, 1
    %p189 = por %p187, %p188
    %p190 = scmp.ne.s32.totalorder %s181, %s182
    %p191 = scmp.eq.s32.totalorder %s19, 0
    %p192 = por %p190, %p191
    %p193 = scmp.ne.s32.totalorder %s181, %s182
    %p194 = scmp.eq.s32.totalorder %s20, 1
    %p195 = por %p193, %p194
    %p197 = scmp.ne.s32.totalorder %s182, %s196
    %p198 = scmp.eq.s32.totalorder %s20, 0
    %p199 = por %p197, %p198
    %s200 = ssub.s32 %s14, %s21
    %p201 = scmp.eq.s32.totalorder %s200, 0
    %s203 = sadd.s32 %s202, 1
    %s204 = scalar_select %p201, %s202, %s203
    %p207 = pneg %p201
    %p208 = scmp.eq.s32.totalorder %s14, 1
    %p209 = por %p207, %p208
    %p210 = scmp.ne.s32.totalorder %s202, %s205
    %p211 = scmp.eq.s32.totalorder %s14, 0
    %p212 = por %p210, %p211
    %p213 = scmp.ne.s32.totalorder %s202, %s205
    %p214 = scmp.eq.s32.totalorder %s19, 1
    %p215 = por %p213, %p214
    %p216 = scmp.ne.s32.totalorder %s205, %s206
    %p217 = scmp.eq.s32.totalorder %s19, 0
    %p218 = por %p216, %p217
    %p219 = scmp.ne.s32.totalorder %s205, %s206
    %p220 = scmp.eq.s32.totalorder %s20, 1
    %p221 = por %p219, %p220
    %p223 = scmp.ne.s32.totalorder %s206, %s222
    %p224 = scmp.eq.s32.totalorder %s20, 0
    %p225 = por %p223, %p224
    %p226 = scmp.le.s32.totalorder 1, %s14
    %p227 = scmp.lt.s32.totalorder %s14, 3
    %p228 = pnand %p226, %p227
    %p229 = pneg %p228
    // Predicated region
    $region9: #{_lambda_.1} parent=5 // pred_check
      _
    $region10: #{_lambda_.1} parent=5 // pred_check_branch
      %231 = sbr.rel (%p228) target = $region12
    $region11: #{_lambda_.1} parent=5 // pred_region
      %s232 = ssub.s32 %s14, 1
      // Predicated region
      $region13: #{_lambda_.1} parent=11 // pred_check
        %p233 = pneg %p87
      $region14: #{_lambda_.1} parent=11 // pred_check_branch
        %235 = sbr.rel (%p233) target = $region16
      $region15: #{_lambda_.1} parent=11 // pred_region
        _
      $region16: #{_lambda_.1} parent=11 // pred_fallthru
        _
      // Predicated region
      $region17: #{_lambda_.1} parent=11 // pred_check
        %p236 = pneg %p108
      $region18: #{_lambda_.1} parent=11 // pred_check_branch
        %238 = sbr.rel (%p236) target = $region20
      $region19: #{_lambda_.1} parent=11 // pred_region
        _
      $region20: #{_lambda_.1} parent=11 // pred_fallthru
        _
      // Predicated region
      $region21: #{_lambda_.1} parent=11 // pred_check
        %p239 = pneg %p129
      $region22: #{_lambda_.1} parent=11 // pred_check_branch
        %241 = sbr.rel (%p239) target = $region24
      $region23: #{_lambda_.1} parent=11 // pred_region
        _
      $region24: #{_lambda_.1} parent=11 // pred_fallthru
        _
      // Predicated region
      $region25: #{_lambda_.1} parent=11 // pred_check
        %p242 = pneg %p150
      $region26: #{_lambda_.1} parent=11 // pred_check_branch
        %244 = sbr.rel (%p242) target = $region28
      $region27: #{_lambda_.1} parent=11 // pred_region
        _
      $region28: #{_lambda_.1} parent=11 // pred_fallthru
        _
      // Predicated region
      $region29: #{_lambda_.1} parent=11 // pred_check
        %p245 = pneg %p171
      $region30: #{_lambda_.1} parent=11 // pred_check_branch
        %247 = sbr.rel (%p245) target = $region32
      $region31: #{_lambda_.1} parent=11 // pred_region
        _
      $region32: #{_lambda_.1} parent=11 // pred_fallthru
        _
      // Predicated region
      $region33: #{_lambda_.1} parent=11 // pred_check
        %p248 = pneg %p192
      $region34: #{_lambda_.1} parent=11 // pred_check_branch
        %250 = sbr.rel (%p248) target = $region36
      $region35: #{_lambda_.1} parent=11 // pred_region
        _
      $region36: #{_lambda_.1} parent=11 // pred_fallthru
        _
    $region12: #{_lambda_.1} parent=5 // pred_fallthru
      _
    %p251 = scmp.lt.s32.totalorder %s14, 2
    // Predicated region
    $region37: #{_lambda_.1} parent=5 // pred_check
      %p252 = pneg %p251
    $region38: #{_lambda_.1} parent=5 // pred_check_branch
      %254 = sbr.rel (%p252) target = $region40
    $region39: #{_lambda_.1} parent=5 // pred_region
      // Predicated region
      $region41: #{_lambda_.1} parent=39 // pred_check
        %p255 = pneg %p34
      $region42: #{_lambda_.1} parent=39 // pred_check_branch
        %257 = sbr.rel (%p255) target = $region44
      $region43: #{_lambda_.1} parent=39 // pred_region
        %s258 = smul.u32 2, %s14
        %p259 = scmp.lt.s32.totalorder %s258, 3
        %s260 = scalar_select %p259, %s258, 3
        %s261 = smul.addr %s260, 8
        %s262 = scalar_lea.vmem %s0, %s261
        %s263 = smul.u32 2, %s14
      $region44: #{_lambda_.1} parent=39 // pred_fallthru
        _
      // Predicated region
      $region45: #{_lambda_.1} parent=39 // pred_check
        %p264 = pneg %p60
      $region46: #{_lambda_.1} parent=39 // pred_check_branch
        %266 = sbr.rel (%p264) target = $region48
      $region47: #{_lambda_.1} parent=39 // pred_region
        %s267 = smul.u32 2, %s14
        %p268 = scmp.lt.s32.totalorder %s267, 3
        %s269 = scalar_select %p268, %s267, 3
        %s270 = smul.addr %s269, 8
        %s271 = scalar_lea.vmem %s1, %s270
        %s272 = smul.u32 2, %s14
      $region48: #{_lambda_.1} parent=39 // pred_fallthru
        _
    $region40: #{_lambda_.1} parent=5 // pred_fallthru
      _
    %p273 = scmp.le.s32.totalorder 1, %s14
    %p274 = scmp.lt.s32.totalorder %s14, 3
    %p275 = pnand %p273, %p274
    %p276 = pneg %p275
    // Predicated region
    $region49: #{_lambda_.1} parent=5 // pred_check
      _
    $region50: #{_lambda_.1} parent=5 // pred_check_branch
      %278 = sbr.rel (%p275) target = $region52
    $region51: #{_lambda_.1} parent=5 // pred_region
      %s279 = ssub.s32 %s14, 1
      %s280 = smul.u32 2, %s19
      %p281 = scmp.lt.s32.totalorder %s280, 3
      %s282 = scalar_select %p281, %s280, 3
      %s283 = smul.addr %s282, 8
      %s284 = scalar_lea.vmem %s0, %s283
      %p285 = pneg %p40
      %p286 = pneg %p37
      %s287 = smul.u32 2, %s19
      %p288 = scmp.lt.s32.totalorder %s287, 3
      %s289 = scalar_select %p288, %s287, 3
      %s290 = smul.addr %s289, 8
      %s291 = scalar_lea.vmem %s1, %s290
      %p292 = pneg %p66
      %p293 = pneg %p63
      %p294 = pneg %p87
      %p295 = pneg %p84
      %p296 = pneg %p108
      %p297 = pneg %p105
      %p298 = pneg %p129
      %p299 = pneg %p126
      %p300 = pneg %p150
      %p301 = pneg %p147
      %p302 = pneg %p171
      %p303 = pneg %p168
      %p304 = pneg %p192
      %p305 = pneg %p189
      %p306 = pneg %p218
      %p307 = pneg %p215
      %s308 = smul.u32 2, %s19
      %p309 = scmp.lt.s32.totalorder %s308, 3
      %s310 = scalar_select %p309, %s308, 3
      %s311 = smul.addr %s310, 2
      %s312 = smul.addr %s311, 8
      %s313 = scalar_lea.vmem %s8, %s312
      %s314 = smul.u32 2, %s19
      %p315 = scmp.lt.s32.totalorder %s314, 3
      %s316 = scalar_select %p315, %s314, 3
      %s317 = smul.addr %s316, 8
      %s318 = scalar_lea.vmem %s0, %s317
      %s319 = smul.u32 2, %s19
      %s320 = smul.u32 2, %s19
      %p321 = scmp.lt.s32.totalorder %s320, 3
      %s322 = scalar_select %p321, %s320, 3
      %s323 = smul.addr %s322, 8
      %s324 = scalar_lea.vmem %s1, %s323
      %s325 = smul.u32 2, %s19
      %s326 = smul.u32 2, %s19
      %p327 = scmp.lt.s32.totalorder %s326, 3
      %s328 = scalar_select %p327, %s326, 3
      %s329 = smul.addr %s328, 2
      %s330 = smul.addr %s329, 8
      %s331 = scalar_lea.vmem %s8, %s330
      %s332 = smul.u32 2, %s19
      %v333 = vlaneseq
      %v334 = vshrl.u32 %v333, 7
      %v335 = vadd.s32 %v334, 8
      %vm336 = vcmp.lt.s32.totalorder %v334, 0
      %v337 = vsub.s32 0, %v334
      %v338 = vsel %vm336, %v337, %v334
      %v339 = vshrl.u32 %v338, 4
      %v340 = vand.u32 %v338, 15
      %v341 = vsub.s32 0, %v340
      %v342 = vsel %vm336, %v341, %v340
      %vm343 = vcmp.lt.s32.totalorder %v335, 0
      %v344 = vsub.s32 0, %v335
      %v345 = vsel %vm343, %v344, %v335
      %v346 = vshrl.u32 %v345, 4
      %v347 = vand.u32 %v345, 15
      %v348 = vsub.s32 0, %v347
      %v349 = vsel %vm343, %v348, %v347
      %vm350 = vcmp.ne.s32.totalorder %v342, 0
      %vm351 = vcmp.ne.s32.totalorder %v349, 0
      %vm352 = vcmp.lt.s32.totalorder %v342, 0
      %vm353 = vcmp.lt.s32.totalorder %v349, 0
      %vm354 = vmand %vm352, %vm350
      %vm355 = vmand %vm353, %vm351
      %v356 = vadd.s32 %v342, 16
      %v357 = vadd.s32 %v349, 16
      %v358 = vsel %vm354, %v356, %v342
      %v359 = vsel %vm355, %v357, %v349
      %v360 = vlaneseq
      %v361 = vand.u32 %v360, 127
      %vm362 = vcmp.eq.s32.totalorder %v358, 0
      %vm363 = vcmp.eq.s32.totalorder %v359, 0
      %vm364 = vcmp.eq.s32.totalorder %v358, 15
      %vm365 = vcmp.eq.s32.totalorder %v359, 15
      %vm366 = vcmp.lt.s32.totalorder %v361, 8
      %vm367 = vcmp.ge.s32.totalorder %v361, 120
      %vm368 = vmor %vm362, %vm364
      %vm369 = vmor %vm363, %vm365
      %v370 = vsel %vm368, 0.5, 0.33333334
      %v371 = vsel %vm369, 0.5, 0.33333334
      %vm372 = vmor %vm366, %vm367
      %v373 = vsel %vm372, 0.5, 0.33333334
      %v374 = vmul.f32 %v370, %v373
      %v375 = vmul.f32 %v371, %v373
      %v376 = vld [vmem:[%s318] sm:$0xff]
      %v377 = vld [vmem:[%s318 + $0x8] sm:$0xff]
      %v378 = vld [vmem:[%s2] sm:$0xff]
      %v379 = vld [vmem:[%s2 + $0x8] sm:$0xff]
      %v380 = vld [vmem:[%s2 + $0x10] sm:$0xff]
      %v381 = vld [vmem:[%s2 + $0x18] sm:$0xff]
      %v382 = vld [vmem:[%s2 + $0x20] sm:$0xff]
      %v383 = vld [vmem:[%s2 + $0x28] sm:$0xff]
      %v384 = vld [vmem:[%s2 + $0x30] sm:$0xff]
      %v385 = vld [vmem:[%s2 + $0x38] sm:$0xff]
      %v386 = vld [vmem:[%s2 + $0x40] sm:$0xff]
      %v387 = vld [vmem:[%s2 + $0x48] sm:$0xff]
      %v388 = vld [vmem:[%s2 + $0x50] sm:$0xff]
      %v389 = vld [vmem:[%s2 + $0x58] sm:$0xff]
      %v390 = vld [vmem:[%s2 + $0x60] sm:$0xff]
      %v391 = vld [vmem:[%s2 + $0x68] sm:$0xff]
      %v392 = vld [vmem:[%s2 + $0x70] sm:$0xff]
      %v393 = vld [vmem:[%s2 + $0x78] sm:$0xff]
      %v394 = vmax.f32 %v376, 0.0
      %v395 = vmax.f32 %v377, 0.0
      %396 = vmatprep.subr.mxu0 0.0
      %397 = vmatpush1.msra.mxu0 %v378
      %398 = vmatprep.subr.mxu0 0.0
      %399 = vmatpush1.msra.mxu0 %v379
      %400 = vmatprep.subr.mxu0 0.0
      %401 = vmatpush1.msra.mxu0 %v380
      %402 = vmatprep.subr.mxu0 0.0
      %403 = vmatpush1.msra.mxu0 %v381
      %404 = vmatprep.subr.mxu0 0.0
      %405 = vmatpush1.msra.mxu0 %v382
      %406 = vmatprep.subr.mxu0 0.0
      %407 = vmatpush1.msra.mxu0 %v383
      %408 = vmatprep.subr.mxu0 0.0
      %409 = vmatpush1.msra.mxu0 %v384
      %410 = vmatprep.subr.mxu0 0.0
      %411 = vmatpush1.msra.mxu0 %v385
      %412 = vmatprep.subr.mxu0 0.0
      %413 = vmatpush1.msra.mxu0 %v386
      %414 = vmatprep.subr.mxu0 0.0
      %415 = vmatpush1.msra.mxu0 %v387
      %416 = vmatprep.subr.mxu0 0.0
      %417 = vmatpush1.msra.mxu0 %v388
      %418 = vmatprep.subr.mxu0 0.0
      %419 = vmatpush1.msra.mxu0 %v389
      %420 = vmatprep.subr.mxu0 0.0
      %421 = vmatpush1.msra.mxu0 %v390
      %422 = vmatprep.subr.mxu0 0.0
      %423 = vmatpush1.msra.mxu0 %v391
      %424 = vmatprep.subr.mxu0 0.0
      %425 = vmatpush1.msra.mxu0 %v392
      %426 = vmatprep.subr.mxu0 0.0
      %427 = vmatpush1.msra.mxu0 %v393
      %428 = vmatprep.subr.mxu0 0.0
      %429 = vmatpush1.msra.mxu0 0.0
      %430 = vmatprep.subr.mxu0 0.0
      %431 = vmatpush1.msra.mxu0 0.0
      %432 = vmatprep.subr.mxu0 0.0
      %433 = vmatpush1.msra.mxu0 0.0
      %434 = vmatprep.subr.mxu0 0.0
      %435 = vmatpush1.msra.mxu0 0.0
      %436 = vmatprep.subr.mxu0 0.0
      %437 = vmatpush1.msra.mxu0 0.0
      %438 = vmatprep.subr.mxu0 0.0
      %439 = vmatpush1.msra.mxu0 0.0
      %440 = vmatprep.subr.mxu0 0.0
      %441 = vmatpush1.msra.mxu0 0.0
      %442 = vmatprep.subr.mxu0 0.0
      %443 = vmatpush1.msra.mxu0 0.0
      %444 = vmatprep.subr.mxu0 0.0
      %445 = vmatpush1.msra.mxu0 0.0
      %446 = vmatprep.subr.mxu0 0.0
      %447 = vmatpush1.msra.mxu0 0.0
      %448 = vmatprep.subr.mxu0 0.0
      %449 = vmatpush1.msra.mxu0 0.0
      %450 = vmatprep.subr.mxu0 0.0
      %451 = vmatpush1.msra.mxu0 0.0
      %452 = vmatprep.subr.mxu0 0.0
      %453 = vmatpush1.msra.mxu0 0.0
      %454 = vmatprep.subr.mxu0 0.0
      %455 = vmatpush1.msra.mxu0 0.0
      %456 = vmatprep.subr.mxu0 0.0
      %457 = vmatpush1.msra.mxu0 0.0
      %458 = vmatprep.subr.mxu0 0.0
      %459 = vmatpush1.msra.mxu0 0.0
      %460 = vmatprep.mubr.f32.mxu0 0.0
      %461 = vmatmul.mubr.f32.gmra.mrb[0].mxu0 %v394
      %v462 = vpop.f32.mrb[0].mxu0
      %v463 = vadd.f32 0.0, %v462
      %v464 = vpop.f32.mrb[0].mxu0
      %465 = vmatprep.mubr.f32.mxu0 0.0
      %466 = vmatmul.mubr.f32.gmra.mrb[0].mxu0 %v395
      %v467 = vpop.f32.mrb[0].mxu0
      %v468 = vadd.f32 0.0, %v467
      %v469 = vpop.f32.mrb[0].mxu0
      %470 = vdwg.mxu0
      %v471 = vld [vmem:[%s6] sm:$0x1]
      %v472 = vlaneseq
      %v473 = vshrl.u32 %v472, 7
      %v474 = vsub.s32 0, %v473
      %v475 = vrot.slane %v471, %v474
      %v476 = vmul.f32 %v463, %v475
      %v477 = vmul.f32 %v468, %v475
      %v478 = vld [vmem:[%s7] sm:$0x1]
      %v479 = vlaneseq
      %v480 = vshrl.u32 %v479, 7
      %v481 = vsub.s32 0, %v480
      %v482 = vrot.slane %v478, %v481
      %v483 = vadd.f32 %v476, %v482
      %v484 = vadd.f32 %v477, %v482
      %v485 = vld [vmem:[%s324] sm:$0xff]
      %v486 = vld [vmem:[%s324 + $0x8] sm:$0xff]
      %v487 = vld [vmem:[%s3] sm:$0xff]
      %v488 = vld [vmem:[%s3 + $0x8] sm:$0xff]
      %v489 = vld [vmem:[%s3 + $0x10] sm:$0xff]
      %v490 = vld [vmem:[%s3 + $0x18] sm:$0xff]
      %v491 = vld [vmem:[%s3 + $0x20] sm:$0xff]
      %v492 = vld [vmem:[%s3 + $0x28] sm:$0xff]
      %v493 = vld [vmem:[%s3 + $0x30] sm:$0xff]
      %v494 = vld [vmem:[%s3 + $0x38] sm:$0xff]
      %v495 = vld [vmem:[%s3 + $0x40] sm:$0xff]
      %v496 = vld [vmem:[%s3 + $0x48] sm:$0xff]
      %v497 = vld [vmem:[%s3 + $0x50] sm:$0xff]
      %v498 = vld [vmem:[%s3 + $0x58] sm:$0xff]
      %v499 = vld [vmem:[%s3 + $0x60] sm:$0xff]
      %v500 = vld [vmem:[%s3 + $0x68] sm:$0xff]
      %v501 = vld [vmem:[%s3 + $0x70] sm:$0xff]
      %v502 = vld [vmem:[%s3 + $0x78] sm:$0xff]
      %v503 = vmax.f32 %v485, 0.0
      %v504 = vmax.f32 %v486, 0.0
      %505 = vmatprep.subr.mxu0 0.0
      %506 = vmatpush1.msra.mxu0 %v487
      %507 = vmatprep.subr.mxu0 0.0
      %508 = vmatpush1.msra.mxu0 %v488
      %509 = vmatprep.subr.mxu0 0.0
      %510 = vmatpush1.msra.mxu0 %v489
      %511 = vmatprep.subr.mxu0 0.0
      %512 = vmatpush1.msra.mxu0 %v490
      %513 = vmatprep.subr.mxu0 0.0
      %514 = vmatpush1.msra.mxu0 %v491
      %515 = vmatprep.subr.mxu0 0.0
      %516 = vmatpush1.msra.mxu0 %v492
      %517 = vmatprep.subr.mxu0 0.0
      %518 = vmatpush1.msra.mxu0 %v493
      %519 = vmatprep.subr.mxu0 0.0
      %520 = vmatpush1.msra.mxu0 %v494
      %521 = vmatprep.subr.mxu0 0.0
      %522 = vmatpush1.msra.mxu0 %v495
      %523 = vmatprep.subr.mxu0 0.0
      %524 = vmatpush1.msra.mxu0 %v496
      %525 = vmatprep.subr.mxu0 0.0
      %526 = vmatpush1.msra.mxu0 %v497
      %527 = vmatprep.subr.mxu0 0.0
      %528 = vmatpush1.msra.mxu0 %v498
      %529 = vmatprep.subr.mxu0 0.0
      %530 = vmatpush1.msra.mxu0 %v499
      %531 = vmatprep.subr.mxu0 0.0
      %532 = vmatpush1.msra.mxu0 %v500
      %533 = vmatprep.subr.mxu0 0.0
      %534 = vmatpush1.msra.mxu0 %v501
      %535 = vmatprep.subr.mxu0 0.0
      %536 = vmatpush1.msra.mxu0 %v502
      %537 = vmatprep.subr.mxu0 0.0
      %538 = vmatpush1.msra.mxu0 0.0
      %539 = vmatprep.subr.mxu0 0.0
      %540 = vmatpush1.msra.mxu0 0.0
      %541 = vmatprep.subr.mxu0 0.0
      %542 = vmatpush1.msra.mxu0 0.0
      %543 = vmatprep.subr.mxu0 0.0
      %544 = vmatpush1.msra.mxu0 0.0
      %545 = vmatprep.subr.mxu0 0.0
      %546 = vmatpush1.msra.mxu0 0.0
      %547 = vmatprep.subr.mxu0 0.0
      %548 = vmatpush1.msra.mxu0 0.0
      %549 = vmatprep.subr.mxu0 0.0
      %550 = vmatpush1.msra.mxu0 0.0
      %551 = vmatprep.subr.mxu0 0.0
      %552 = vmatpush1.msra.mxu0 0.0
      %553 = vmatprep.subr.mxu0 0.0
      %554 = vmatpush1.msra.mxu0 0.0
      %555 = vmatprep.subr.mxu0 0.0
      %556 = vmatpush1.msra.mxu0 0.0
      %557 = vmatprep.subr.mxu0 0.0
      %558 = vmatpush1.msra.mxu0 0.0
      %559 = vmatprep.subr.mxu0 0.0
      %560 = vmatpush1.msra.mxu0 0.0
      %561 = vmatprep.subr.mxu0 0.0
      %562 = vmatpush1.msra.mxu0 0.0
      %563 = vmatprep.subr.mxu0 0.0
      %564 = vmatpush1.msra.mxu0 0.0
      %565 = vmatprep.subr.mxu0 0.0
      %566 = vmatpush1.msra.mxu0 0.0
      %567 = vmatprep.subr.mxu0 0.0
      %568 = vmatpush1.msra.mxu0 0.0
      %569 = vmatprep.mubr.f32.mxu0 0.0
      %570 = vmatmul.mubr.f32.gmra.mrb[0].mxu0 %v503
      %v571 = vpop.f32.mrb[0].mxu0
      %v572 = vadd.f32 0.0, %v571
      %v573 = vpop.f32.mrb[0].mxu0
      %574 = vmatprep.mubr.f32.mxu0 0.0
      %575 = vmatmul.mubr.f32.gmra.mrb[0].mxu0 %v504
      %v576 = vpop.f32.mrb[0].mxu0
      %v577 = vadd.f32 0.0, %v576
      %v578 = vpop.f32.mrb[0].mxu0
      %579 = vdwg.mxu0
      %v580 = vld [vmem:[%s6 + $0x1] sm:$0x1]
      %v581 = vlaneseq
      %v582 = vshrl.u32 %v581, 7
      %v583 = vsub.s32 0, %v582
      %v584 = vrot.slane %v580, %v583
      %v585 = vmul.f32 %v572, %v584
      %v586 = vmul.f32 %v577, %v584
      %v587 = vld [vmem:[%s7 + $0x1] sm:$0x1]
      %v588 = vlaneseq
      %v589 = vshrl.u32 %v588, 7
      %v590 = vsub.s32 0, %v589
      %v591 = vrot.slane %v587, %v590
      %v592 = vadd.f32 %v585, %v591
      %v593 = vadd.f32 %v586, %v591
      %v594 = vmax.f32 %v483, 0.0
      %v595 = vmax.f32 %v484, 0.0
      %v596 = vld [vmem:[%s4] sm:$0xff]
      %v597 = vld [vmem:[%s4 + $0x8] sm:$0x1]
      %v598 = vrot.slane %v594, 7
      %v599 = vrot.slane %v595, 7
      %vm600 = vcmp.lt.s32.totalorder %v334, 1
      %v601 = vsel %vm600, %v598, %v599
      %v602 = vsel %vm600, %v599, %v598
      %v603 = vsel %vm362, 0.0, %v602
      %v604 = vsel %vm363, 0.0, %v601
      %v605 = vrot.slane %v594, 1
      %v606 = vrot.slane %v595, 1
      %vm607 = vcmp.lt.s32.totalorder %v334, 7
      %v608 = vsel %vm607, %v605, %v606
      %v609 = vsel %vm607, %v606, %v605
      %v610 = vsel %vm364, 0.0, %v608
      %v611 = vsel %vm365, 0.0, %v609
      %v612 = vlaneseq
      %v613 = vshrl.u32 %v612, 7
      %v614 = vsub.s32 0, %v613
      %v615 = vrot.slane %v596, %v614
      %v616 = vmul.f32 %v603, %v615
      %v617 = vmul.f32 %v604, %v615
      %v618 = vlaneseq
      %v619 = vshrl.u32 %v618, 7
      %v620 = vsub.s32 3, %v619
      %v621 = vrot.slane %v596, %v620
      %v622 = vmul.f32 %v594, %v621
      %v623 = vmul.f32 %v595, %v621
      %v624 = vadd.f32 %v616, %v622
      %v625 = vadd.f32 %v617, %v623
      %v626 = vlaneseq
      %v627 = vshrl.u32 %v626, 7
      %v628 = vsub.s32 6, %v627
      %v629 = vrot.slane %v596, %v628
      %v630 = vmul.f32 %v610, %v629
      %v631 = vmul.f32 %v611, %v629
      %v632 = vadd.f32 %v624, %v630
      %v633 = vadd.f32 %v625, %v631
      %v634 = vlaneseq
      %v635 = vshrl.u32 %v634, 7
      %v636 = vsub.s32 1, %v635
      %v637 = vrot.slane %v596, %v636
      %v638 = vmul.f32 %v603, %v637
      %v639 = vmul.f32 %v604, %v637
      %v640 = vlaneseq
      %v641 = vshrl.u32 %v640, 7
      %v642 = vsub.s32 4, %v641
      %v643 = vrot.slane %v596, %v642
      %v644 = vmul.f32 %v594, %v643
      %v645 = vmul.f32 %v595, %v643
      %v646 = vadd.f32 %v638, %v644
      %v647 = vadd.f32 %v639, %v645
      %v648 = vlaneseq
      %v649 = vshrl.u32 %v648, 7
      %v650 = vsub.s32 7, %v649
      %v651 = vrot.slane %v596, %v650
      %v652 = vmul.f32 %v610, %v651
      %v653 = vmul.f32 %v611, %v651
      %v654 = vadd.f32 %v646, %v652
      %v655 = vadd.f32 %v647, %v653
      %v656 = vlaneseq
      %v657 = vshrl.u32 %v656, 7
      %v658 = vsub.s32 2, %v657
      %v659 = vrot.slane %v596, %v658
      %v660 = vmul.f32 %v603, %v659
      %v661 = vmul.f32 %v604, %v659
      %v662 = vlaneseq
      %v663 = vshrl.u32 %v662, 7
      %v664 = vsub.s32 5, %v663
      %v665 = vrot.slane %v596, %v664
      %v666 = vmul.f32 %v594, %v665
      %v667 = vmul.f32 %v595, %v665
      %v668 = vadd.f32 %v660, %v666
      %v669 = vadd.f32 %v661, %v667
      %v670 = vlaneseq
      %v671 = vshrl.u32 %v670, 7
      %v672 = vsub.s32 0, %v671
      %v673 = vrot.slane %v597, %v672
      %v674 = vmul.f32 %v610, %v673
      %v675 = vmul.f32 %v611, %v673
      %v676 = vadd.f32 %v668, %v674
      %v677 = vadd.f32 %v669, %v675
      %678 = vrot.lane.b32.xlu0 %v632, 8
      %v679 = vpop.permute.xlu0 %678
      %680 = vrot.lane.b32.xlu0 %v633, 8
      %v681 = vpop.permute.xlu0 %680
      %v682 = vsel %vm366, 0.0, %v679
      %v683 = vsel %vm366, 0.0, %v681
      %v684 = vadd.f32 %v682, %v654
      %v685 = vadd.f32 %v683, %v655
      %686 = vrot.lane.b32.xlu0 %v676, 120
      %v687 = vpop.permute.xlu0 %686
      %688 = vrot.lane.b32.xlu0 %v677, 120
      %v689 = vpop.permute.xlu0 %688
      %v690 = vsel %vm367, 0.0, %v687
      %v691 = vsel %vm367, 0.0, %v689
      %v692 = vadd.f32 %v684, %v690
      %v693 = vadd.f32 %v685, %v691
      %v694 = vld [vmem:[%s5] sm:$0xff]
      %v695 = vld [vmem:[%s5 + $0x8] sm:$0xff]
      %v696 = vld [vmem:[%s5 + $0x10] sm:$0xff]
      %v697 = vld [vmem:[%s5 + $0x18] sm:$0xff]
      %v698 = vld [vmem:[%s5 + $0x20] sm:$0xff]
      %v699 = vld [vmem:[%s5 + $0x28] sm:$0xff]
      %v700 = vld [vmem:[%s5 + $0x30] sm:$0xff]
      %v701 = vld [vmem:[%s5 + $0x38] sm:$0xff]
      %v702 = vld [vmem:[%s5 + $0x40] sm:$0xff]
      %v703 = vld [vmem:[%s5 + $0x48] sm:$0xff]
      %v704 = vld [vmem:[%s5 + $0x50] sm:$0xff]
      %v705 = vld [vmem:[%s5 + $0x58] sm:$0xff]
      %v706 = vld [vmem:[%s5 + $0x60] sm:$0xff]
      %v707 = vld [vmem:[%s5 + $0x68] sm:$0xff]
      %v708 = vld [vmem:[%s5 + $0x70] sm:$0xff]
      %v709 = vld [vmem:[%s5 + $0x78] sm:$0xff]
      %710 = vmatprep.subr.mxu0 0.0
      %711 = vmatpush1.msra.mxu0 %v694
      %712 = vmatprep.subr.mxu0 0.0
      %713 = vmatpush1.msra.mxu0 %v695
      %714 = vmatprep.subr.mxu0 0.0
      %715 = vmatpush1.msra.mxu0 %v696
      %716 = vmatprep.subr.mxu0 0.0
      %717 = vmatpush1.msra.mxu0 %v697
      %718 = vmatprep.subr.mxu0 0.0
      %719 = vmatpush1.msra.mxu0 %v698
      %720 = vmatprep.subr.mxu0 0.0
      %721 = vmatpush1.msra.mxu0 %v699
      %722 = vmatprep.subr.mxu0 0.0
      %723 = vmatpush1.msra.mxu0 %v700
      %724 = vmatprep.subr.mxu0 0.0
      %725 = vmatpush1.msra.mxu0 %v701
      %726 = vmatprep.subr.mxu0 0.0
      %727 = vmatpush1.msra.mxu0 %v702
      %728 = vmatprep.subr.mxu0 0.0
      %729 = vmatpush1.msra.mxu0 %v703
      %730 = vmatprep.subr.mxu0 0.0
      %731 = vmatpush1.msra.mxu0 %v704
      %732 = vmatprep.subr.mxu0 0.0
      %733 = vmatpush1.msra.mxu0 %v705
      %734 = vmatprep.subr.mxu0 0.0
      %735 = vmatpush1.msra.mxu0 %v706
      %736 = vmatprep.subr.mxu0 0.0
      %737 = vmatpush1.msra.mxu0 %v707
      %738 = vmatprep.subr.mxu0 0.0
      %739 = vmatpush1.msra.mxu0 %v708
      %740 = vmatprep.subr.mxu0 0.0
      %741 = vmatpush1.msra.mxu0 %v709
      %742 = vmatprep.subr.mxu0 0.0
      %743 = vmatpush1.msra.mxu0 0.0
      %744 = vmatprep.subr.mxu0 0.0
      %745 = vmatpush1.msra.mxu0 0.0
      %746 = vmatprep.subr.mxu0 0.0
      %747 = vmatpush1.msra.mxu0 0.0
      %748 = vmatprep.subr.mxu0 0.0
      %749 = vmatpush1.msra.mxu0 0.0
      %750 = vmatprep.subr.mxu0 0.0
      %751 = vmatpush1.msra.mxu0 0.0
      %752 = vmatprep.subr.mxu0 0.0
      %753 = vmatpush1.msra.mxu0 0.0
      %754 = vmatprep.subr.mxu0 0.0
      %755 = vmatpush1.msra.mxu0 0.0
      %756 = vmatprep.subr.mxu0 0.0
      %757 = vmatpush1.msra.mxu0 0.0
      %758 = vmatprep.subr.mxu0 0.0
      %759 = vmatpush1.msra.mxu0 0.0
      %760 = vmatprep.subr.mxu0 0.0
      %761 = vmatpush1.msra.mxu0 0.0
      %762 = vmatprep.subr.mxu0 0.0
      %763 = vmatpush1.msra.mxu0 0.0
      %764 = vmatprep.subr.mxu0 0.0
      %765 = vmatpush1.msra.mxu0 0.0
      %766 = vmatprep.subr.mxu0 0.0
      %767 = vmatpush1.msra.mxu0 0.0
      %768 = vmatprep.subr.mxu0 0.0
      %769 = vmatpush1.msra.mxu0 0.0
      %770 = vmatprep.subr.mxu0 0.0
      %771 = vmatpush1.msra.mxu0 0.0
      %772 = vmatprep.subr.mxu0 0.0
      %773 = vmatpush1.msra.mxu0 0.0
      %774 = vmatprep.mubr.f32.mxu0 0.0
      %775 = vmatmul.mubr.f32.gmra.mrb[0].mxu0 %v692
      %v776 = vpop.f32.mrb[0].mxu0
      %v777 = vadd.f32 0.0, %v776
      %v778 = vpop.f32.mrb[0].mxu0
      %779 = vmatprep.mubr.f32.mxu0 0.0
      %780 = vmatmul.mubr.f32.gmra.mrb[0].mxu0 %v693
      %v781 = vpop.f32.mrb[0].mxu0
      %v782 = vadd.f32 0.0, %v781
      %v783 = vpop.f32.mrb[0].mxu0
      %784 = vdwg.mxu0
      %v785 = vld [vmem:[%s6 + $0x2] sm:$0x1]
      %v786 = vlaneseq
      %v787 = vshrl.u32 %v786, 7
      %v788 = vsub.s32 0, %v787
      %v789 = vrot.slane %v785, %v788
      %v790 = vmul.f32 %v777, %v789
      %v791 = vmul.f32 %v782, %v789
      %v792 = vld [vmem:[%s7 + $0x2] sm:$0x1]
      %v793 = vlaneseq
      %v794 = vshrl.u32 %v793, 7
      %v795 = vsub.s32 0, %v794
      %v796 = vrot.slane %v792, %v795
      %v797 = vadd.f32 %v790, %v796
      %v798 = vadd.f32 %v791, %v796
      %v799 = vmax.f32 %v797, 0.0
      %v800 = vmax.f32 %v798, 0.0
      %s801 = scalar_lea.vmem %s4, 16
      %v802 = vld [vmem:[%s801] sm:$0xff]
      %v803 = vld [vmem:[%s801 + $0x8] sm:$0x1]
      %v804 = vrot.slane %v799, 7
      %v805 = vrot.slane %v800, 7
      %v806 = vsel %vm600, %v804, %v805
      %v807 = vsel %vm600, %v805, %v804
      %v808 = vsel %vm362, 0.0, %v807
      %v809 = vsel %vm363, 0.0, %v806
      %v810 = vrot.slane %v799, 1
      %v811 = vrot.slane %v800, 1
      %v812 = vsel %vm607, %v810, %v811
      %v813 = vsel %vm607, %v811, %v810
      %v814 = vsel %vm364, 0.0, %v812
      %v815 = vsel %vm365, 0.0, %v813
      %v816 = vlaneseq
      %v817 = vshrl.u32 %v816, 7
      %v818 = vsub.s32 0, %v817
      %v819 = vrot.slane %v802, %v818
      %v820 = vmul.f32 %v808, %v819
      %v821 = vmul.f32 %v809, %v819
      %v822 = vlaneseq
      %v823 = vshrl.u32 %v822, 7
      %v824 = vsub.s32 3, %v823
      %v825 = vrot.slane %v802, %v824
      %v826 = vmul.f32 %v799, %v825
      %v827 = vmul.f32 %v800, %v825
      %v828 = vadd.f32 %v820, %v826
      %v829 = vadd.f32 %v821, %v827
      %v830 = vlaneseq
      %v831 = vshrl.u32 %v830, 7
      %v832 = vsub.s32 6, %v831
      %v833 = vrot.slane %v802, %v832
      %v834 = vmul.f32 %v814, %v833
      %v835 = vmul.f32 %v815, %v833
      %v836 = vadd.f32 %v828, %v834
      %v837 = vadd.f32 %v829, %v835
      %v838 = vlaneseq
      %v839 = vshrl.u32 %v838, 7
      %v840 = vsub.s32 1, %v839
      %v841 = vrot.slane %v802, %v840
      %v842 = vmul.f32 %v808, %v841
      %v843 = vmul.f32 %v809, %v841
      %v844 = vlaneseq
      %v845 = vshrl.u32 %v844, 7
      %v846 = vsub.s32 4, %v845
      %v847 = vrot.slane %v802, %v846
      %v848 = vmul.f32 %v799, %v847
      %v849 = vmul.f32 %v800, %v847
      %v850 = vadd.f32 %v842, %v848
      %v851 = vadd.f32 %v843, %v849
      %v852 = vlaneseq
      %v853 = vshrl.u32 %v852, 7
      %v854 = vsub.s32 7, %v853
      %v855 = vrot.slane %v802, %v854
      %v856 = vmul.f32 %v814, %v855
      %v857 = vmul.f32 %v815, %v855
      %v858 = vadd.f32 %v850, %v856
      %v859 = vadd.f32 %v851, %v857
      %v860 = vlaneseq
      %v861 = vshrl.u32 %v860, 7
      %v862 = vsub.s32 2, %v861
      %v863 = vrot.slane %v802, %v862
      %v864 = vmul.f32 %v808, %v863
      %v865 = vmul.f32 %v809, %v863
      %v866 = vlaneseq
      %v867 = vshrl.u32 %v866, 7
      %v868 = vsub.s32 5, %v867
      %v869 = vrot.slane %v802, %v868
      %v870 = vmul.f32 %v799, %v869
      %v871 = vmul.f32 %v800, %v869
      %v872 = vadd.f32 %v864, %v870
      %v873 = vadd.f32 %v865, %v871
      %v874 = vlaneseq
      %v875 = vshrl.u32 %v874, 7
      %v876 = vsub.s32 0, %v875
      %v877 = vrot.slane %v803, %v876
      %v878 = vmul.f32 %v814, %v877
      %v879 = vmul.f32 %v815, %v877
      %v880 = vadd.f32 %v872, %v878
      %v881 = vadd.f32 %v873, %v879
      %882 = vrot.lane.b32.xlu0 %v836, 8
      %v883 = vpop.permute.xlu0 %882
      %884 = vrot.lane.b32.xlu0 %v837, 8
      %v885 = vpop.permute.xlu0 %884
      %v886 = vsel %vm366, 0.0, %v883
      %v887 = vsel %vm366, 0.0, %v885
      %v888 = vadd.f32 %v886, %v858
      %v889 = vadd.f32 %v887, %v859
      %890 = vrot.lane.b32.xlu0 %v880, 120
      %v891 = vpop.permute.xlu0 %890
      %892 = vrot.lane.b32.xlu0 %v881, 120
      %v893 = vpop.permute.xlu0 %892
      %v894 = vsel %vm367, 0.0, %v891
      %v895 = vsel %vm367, 0.0, %v893
      %v896 = vadd.f32 %v888, %v894
      %v897 = vadd.f32 %v889, %v895
      %s898 = scalar_lea.vmem %s5, 128
      %v899 = vld [vmem:[%s898] sm:$0xff]
      %v900 = vld [vmem:[%s898 + $0x8] sm:$0xff]
      %v901 = vld [vmem:[%s898 + $0x10] sm:$0xff]
      %v902 = vld [vmem:[%s898 + $0x18] sm:$0xff]
      %v903 = vld [vmem:[%s898 + $0x20] sm:$0xff]
      %v904 = vld [vmem:[%s898 + $0x28] sm:$0xff]
      %v905 = vld [vmem:[%s898 + $0x30] sm:$0xff]
      %v906 = vld [vmem:[%s898 + $0x38] sm:$0xff]
      %v907 = vld [vmem:[%s898 + $0x40] sm:$0xff]
      %v908 = vld [vmem:[%s898 + $0x48] sm:$0xff]
      %v909 = vld [vmem:[%s898 + $0x50] sm:$0xff]
      %v910 = vld [vmem:[%s898 + $0x58] sm:$0xff]
      %v911 = vld [vmem:[%s898 + $0x60] sm:$0xff]
      %v912 = vld [vmem:[%s898 + $0x68] sm:$0xff]
      %v913 = vld [vmem:[%s898 + $0x70] sm:$0xff]
      %v914 = vld [vmem:[%s898 + $0x78] sm:$0xff]
      %915 = vmatprep.subr.mxu0 0.0
      %916 = vmatpush1.msra.mxu0 %v899
      %917 = vmatprep.subr.mxu0 0.0
      %918 = vmatpush1.msra.mxu0 %v900
      %919 = vmatprep.subr.mxu0 0.0
      %920 = vmatpush1.msra.mxu0 %v901
      %921 = vmatprep.subr.mxu0 0.0
      %922 = vmatpush1.msra.mxu0 %v902
      %923 = vmatprep.subr.mxu0 0.0
      %924 = vmatpush1.msra.mxu0 %v903
      %925 = vmatprep.subr.mxu0 0.0
      %926 = vmatpush1.msra.mxu0 %v904
      %927 = vmatprep.subr.mxu0 0.0
      %928 = vmatpush1.msra.mxu0 %v905
      %929 = vmatprep.subr.mxu0 0.0
      %930 = vmatpush1.msra.mxu0 %v906
      %931 = vmatprep.subr.mxu0 0.0
      %932 = vmatpush1.msra.mxu0 %v907
      %933 = vmatprep.subr.mxu0 0.0
      %934 = vmatpush1.msra.mxu0 %v908
      %935 = vmatprep.subr.mxu0 0.0
      %936 = vmatpush1.msra.mxu0 %v909
      %937 = vmatprep.subr.mxu0 0.0
      %938 = vmatpush1.msra.mxu0 %v910
      %939 = vmatprep.subr.mxu0 0.0
      %940 = vmatpush1.msra.mxu0 %v911
      %941 = vmatprep.subr.mxu0 0.0
      %942 = vmatpush1.msra.mxu0 %v912
      %943 = vmatprep.subr.mxu0 0.0
      %944 = vmatpush1.msra.mxu0 %v913
      %945 = vmatprep.subr.mxu0 0.0
      %946 = vmatpush1.msra.mxu0 %v914
      %947 = vmatprep.subr.mxu0 0.0
      %948 = vmatpush1.msra.mxu0 0.0
      %949 = vmatprep.subr.mxu0 0.0
      %950 = vmatpush1.msra.mxu0 0.0
      %951 = vmatprep.subr.mxu0 0.0
      %952 = vmatpush1.msra.mxu0 0.0
      %953 = vmatprep.subr.mxu0 0.0
      %954 = vmatpush1.msra.mxu0 0.0
      %955 = vmatprep.subr.mxu0 0.0
      %956 = vmatpush1.msra.mxu0 0.0
      %957 = vmatprep.subr.mxu0 0.0
      %958 = vmatpush1.msra.mxu0 0.0
      %959 = vmatprep.subr.mxu0 0.0
      %960 = vmatpush1.msra.mxu0 0.0
      %961 = vmatprep.subr.mxu0 0.0
      %962 = vmatpush1.msra.mxu0 0.0
      %963 = vmatprep.subr.mxu0 0.0
      %964 = vmatpush1.msra.mxu0 0.0
      %965 = vmatprep.subr.mxu0 0.0
      %966 = vmatpush1.msra.mxu0 0.0
      %967 = vmatprep.subr.mxu0 0.0
      %968 = vmatpush1.msra.mxu0 0.0
      %969 = vmatprep.subr.mxu0 0.0
      %970 = vmatpush1.msra.mxu0 0.0
      %971 = vmatprep.subr.mxu0 0.0
      %972 = vmatpush1.msra.mxu0 0.0
      %973 = vmatprep.subr.mxu0 0.0
      %974 = vmatpush1.msra.mxu0 0.0
      %975 = vmatprep.subr.mxu0 0.0
      %976 = vmatpush1.msra.mxu0 0.0
      %977 = vmatprep.subr.mxu0 0.0
      %978 = vmatpush1.msra.mxu0 0.0
      %979 = vmatprep.mubr.f32.mxu0 0.0
      %980 = vmatmul.mubr.f32.gmra.mrb[0].mxu0 %v896
      %v981 = vpop.f32.mrb[0].mxu0
      %v982 = vadd.f32 0.0, %v981
      %v983 = vpop.f32.mrb[0].mxu0
      %984 = vmatprep.mubr.f32.mxu0 0.0
      %985 = vmatmul.mubr.f32.gmra.mrb[0].mxu0 %v897
      %v986 = vpop.f32.mrb[0].mxu0
      %v987 = vadd.f32 0.0, %v986
      %v988 = vpop.f32.mrb[0].mxu0
      %989 = vdwg.mxu0
      %v990 = vld [vmem:[%s6 + $0x3] sm:$0x1]
      %v991 = vlaneseq
      %v992 = vshrl.u32 %v991, 7
      %v993 = vsub.s32 0, %v992
      %v994 = vrot.slane %v990, %v993
      %v995 = vmul.f32 %v982, %v994
      %v996 = vmul.f32 %v987, %v994
      %v997 = vld [vmem:[%s7 + $0x3] sm:$0x1]
      %v998 = vlaneseq
      %v999 = vshrl.u32 %v998, 7
      %v1000 = vsub.s32 0, %v999
      %v1001 = vrot.slane %v997, %v1000
      %v1002 = vadd.f32 %v995, %v1001
      %v1003 = vadd.f32 %v996, %v1001
      %v1004 = vadd.f32 %v1002, %v592
      %v1005 = vadd.f32 %v1003, %v593
      %v1006 = vrot.slane %v483, 7
      %v1007 = vrot.slane %v484, 7
      %v1008 = vsel %vm600, %v1006, %v1007
      %v1009 = vsel %vm600, %v1007, %v1006
      %v1010 = vsel %vm362, 0.0, %v1009
      %v1011 = vsel %vm363, 0.0, %v1008
      %v1012 = vadd.f32 %v1010, %v483
      %v1013 = vadd.f32 %v1011, %v484
      %v1014 = vrot.slane %v483, 1
      %v1015 = vrot.slane %v484, 1
      %v1016 = vsel %vm607, %v1014, %v1015
      %v1017 = vsel %vm607, %v1015, %v1014
      %v1018 = vsel %vm364, 0.0, %v1016
      %v1019 = vsel %vm365, 0.0, %v1017
      %v1020 = vadd.f32 %v1012, %v1018
      %v1021 = vadd.f32 %v1013, %v1019
      %1022 = vrot.lane.b32.xlu0 %v1020, 8
      %v1023 = vpop.permute.xlu0 %1022
      %1024 = vrot.lane.b32.xlu0 %v1021, 8
      %v1025 = vpop.permute.xlu0 %1024
      %v1026 = vsel %vm366, 0.0, %v1023
      %v1027 = vsel %vm366, 0.0, %v1025
      %v1028 = vadd.f32 %v1026, %v1020
      %v1029 = vadd.f32 %v1027, %v1021
      %1030 = vrot.lane.b32.xlu0 %v1020, 120
      %v1031 = vpop.permute.xlu0 %1030
      %1032 = vrot.lane.b32.xlu0 %v1021, 120
      %v1033 = vpop.permute.xlu0 %1032
      %v1034 = vsel %vm367, 0.0, %v1031
      %v1035 = vsel %vm367, 0.0, %v1033
      %v1036 = vadd.f32 %v1028, %v1034
      %v1037 = vadd.f32 %v1029, %v1035
      %v1038 = vmul.f32 %v1036, %v374
      %v1039 = vmul.f32 %v1037, %v375
      %v1040 = vld [vmem:[%s6 + $0x6] sm:$0x1]
      %v1041 = vlaneseq
      %v1042 = vshrl.u32 %v1041, 7
      %v1043 = vsub.s32 0, %v1042
      %v1044 = vrot.slane %v1040, %v1043
      %v1045 = vmul.f32 %v1038, %v1044
      %v1046 = vmul.f32 %v1039, %v1044
      %v1047 = vld [vmem:[%s7 + $0x6] sm:$0x1]
      %v1048 = vlaneseq
      %v1049 = vshrl.u32 %v1048, 7
      %v1050 = vsub.s32 0, %v1049
      %v1051 = vrot.slane %v1047, %v1050
      %v1052 = vadd.f32 %v1045, %v1051
      %v1053 = vadd.f32 %v1046, %v1051
      %v1054 = vmax.f32 %v1004, 0.0
      %v1055 = vmax.f32 %v1005, 0.0
      %s1056 = scalar_lea.vmem %s4, 32
      %v1057 = vld [vmem:[%s1056] sm:$0xff]
      %v1058 = vld [vmem:[%s1056 + $0x8] sm:$0x1]
      %v1059 = vrot.slane %v1054, 7
      %v1060 = vrot.slane %v1055, 7
      %v1061 = vsel %vm600, %v1059, %v1060
      %v1062 = vsel %vm600, %v1060, %v1059
      %v1063 = vsel %vm362, 0.0, %v1062
      %v1064 = vsel %vm363, 0.0, %v1061
      %v1065 = vrot.slane %v1054, 1
      %v1066 = vrot.slane %v1055, 1
      %v1067 = vsel %vm607, %v1065, %v1066
      %v1068 = vsel %vm607, %v1066, %v1065
      %v1069 = vsel %vm364, 0.0, %v1067
      %v1070 = vsel %vm365, 0.0, %v1068
      %v1071 = vlaneseq
      %v1072 = vshrl.u32 %v1071, 7
      %v1073 = vsub.s32 0, %v1072
      %v1074 = vrot.slane %v1057, %v1073
      %v1075 = vmul.f32 %v1063, %v1074
      %v1076 = vmul.f32 %v1064, %v1074
      %v1077 = vlaneseq
      %v1078 = vshrl.u32 %v1077, 7
      %v1079 = vsub.s32 3, %v1078
      %v1080 = vrot.slane %v1057, %v1079
      %v1081 = vmul.f32 %v1054, %v1080
      %v1082 = vmul.f32 %v1055, %v1080
      %v1083 = vadd.f32 %v1075, %v1081
      %v1084 = vadd.f32 %v1076, %v1082
      %v1085 = vlaneseq
      %v1086 = vshrl.u32 %v1085, 7
      %v1087 = vsub.s32 6, %v1086
      %v1088 = vrot.slane %v1057, %v1087
      %v1089 = vmul.f32 %v1069, %v1088
      %v1090 = vmul.f32 %v1070, %v1088
      %v1091 = vadd.f32 %v1083, %v1089
      %v1092 = vadd.f32 %v1084, %v1090
      %v1093 = vlaneseq
      %v1094 = vshrl.u32 %v1093, 7
      %v1095 = vsub.s32 1, %v1094
      %v1096 = vrot.slane %v1057, %v1095
      %v1097 = vmul.f32 %v1063, %v1096
      %v1098 = vmul.f32 %v1064, %v1096
      %v1099 = vlaneseq
      %v1100 = vshrl.u32 %v1099, 7
      %v1101 = vsub.s32 4, %v1100
      %v1102 = vrot.slane %v1057, %v1101
      %v1103 = vmul.f32 %v1054, %v1102
      %v1104 = vmul.f32 %v1055, %v1102
      %v1105 = vadd.f32 %v1097, %v1103
      %v1106 = vadd.f32 %v1098, %v1104
      %v1107 = vlaneseq
      %v1108 = vshrl.u32 %v1107, 7
      %v1109 = vsub.s32 7, %v1108
      %v1110 = vrot.slane %v1057, %v1109
      %v1111 = vmul.f32 %v1069, %v1110
      %v1112 = vmul.f32 %v1070, %v1110
      %v1113 = vadd.f32 %v1105, %v1111
      %v1114 = vadd.f32 %v1106, %v1112
      %v1115 = vlaneseq
      %v1116 = vshrl.u32 %v1115, 7
      %v1117 = vsub.s32 2, %v1116
      %v1118 = vrot.slane %v1057, %v1117
      %v1119 = vmul.f32 %v1063, %v1118
      %v1120 = vmul.f32 %v1064, %v1118
      %v1121 = vlaneseq
      %v1122 = vshrl.u32 %v1121, 7
      %v1123 = vsub.s32 5, %v1122
      %v1124 = vrot.slane %v1057, %v1123
      %v1125 = vmul.f32 %v1054, %v1124
      %v1126 = vmul.f32 %v1055, %v1124
      %v1127 = vadd.f32 %v1119, %v1125
      %v1128 = vadd.f32 %v1120, %v1126
      %v1129 = vlaneseq
      %v1130 = vshrl.u32 %v1129, 7
      %v1131 = vsub.s32 0, %v1130
      %v1132 = vrot.slane %v1058, %v1131
      %v1133 = vmul.f32 %v1069, %v1132
      %v1134 = vmul.f32 %v1070, %v1132
      %v1135 = vadd.f32 %v1127, %v1133
      %v1136 = vadd.f32 %v1128, %v1134
      %1137 = vrot.lane.b32.xlu0 %v1091, 8
      %v1138 = vpop.permute.xlu0 %1137
      %1139 = vrot.lane.b32.xlu0 %v1092, 8
      %v1140 = vpop.permute.xlu0 %1139
      %v1141 = vsel %vm366, 0.0, %v1138
      %v1142 = vsel %vm366, 0.0, %v1140
      %v1143 = vadd.f32 %v1141, %v1113
      %v1144 = vadd.f32 %v1142, %v1114
      %1145 = vrot.lane.b32.xlu0 %v1135, 120
      %v1146 = vpop.permute.xlu0 %1145
      %1147 = vrot.lane.b32.xlu0 %v1136, 120
      %v1148 = vpop.permute.xlu0 %1147
      %v1149 = vsel %vm367, 0.0, %v1146
      %v1150 = vsel %vm367, 0.0, %v1148
      %v1151 = vadd.f32 %v1143, %v1149
      %v1152 = vadd.f32 %v1144, %v1150
      %s1153 = scalar_lea.vmem %s5, 256
      %v1154 = vld [vmem:[%s1153] sm:$0xff]
      %v1155 = vld [vmem:[%s1153 + $0x8] sm:$0xff]
      %v1156 = vld [vmem:[%s1153 + $0x10] sm:$0xff]
      %v1157 = vld [vmem:[%s1153 + $0x18] sm:$0xff]
      %v1158 = vld [vmem:[%s1153 + $0x20] sm:$0xff]
      %v1159 = vld [vmem:[%s1153 + $0x28] sm:$0xff]
      %v1160 = vld [vmem:[%s1153 + $0x30] sm:$0xff]
      %v1161 = vld [vmem:[%s1153 + $0x38] sm:$0xff]
      %v1162 = vld [vmem:[%s1153 + $0x40] sm:$0xff]
      %v1163 = vld [vmem:[%s1153 + $0x48] sm:$0xff]
      %v1164 = vld [vmem:[%s1153 + $0x50] sm:$0xff]
      %v1165 = vld [vmem:[%s1153 + $0x58] sm:$0xff]
      %v1166 = vld [vmem:[%s1153 + $0x60] sm:$0xff]
      %v1167 = vld [vmem:[%s1153 + $0x68] sm:$0xff]
      %v1168 = vld [vmem:[%s1153 + $0x70] sm:$0xff]
      %v1169 = vld [vmem:[%s1153 + $0x78] sm:$0xff]
      %1170 = vmatprep.subr.mxu0 0.0
      %1171 = vmatpush1.msra.mxu0 %v1154
      %1172 = vmatprep.subr.mxu0 0.0
      %1173 = vmatpush1.msra.mxu0 %v1155
      %1174 = vmatprep.subr.mxu0 0.0
      %1175 = vmatpush1.msra.mxu0 %v1156
      %1176 = vmatprep.subr.mxu0 0.0
      %1177 = vmatpush1.msra.mxu0 %v1157
      %1178 = vmatprep.subr.mxu0 0.0
      %1179 = vmatpush1.msra.mxu0 %v1158
      %1180 = vmatprep.subr.mxu0 0.0
      %1181 = vmatpush1.msra.mxu0 %v1159
      %1182 = vmatprep.subr.mxu0 0.0
      %1183 = vmatpush1.msra.mxu0 %v1160
      %1184 = vmatprep.subr.mxu0 0.0
      %1185 = vmatpush1.msra.mxu0 %v1161
      %1186 = vmatprep.subr.mxu0 0.0
      %1187 = vmatpush1.msra.mxu0 %v1162
      %1188 = vmatprep.subr.mxu0 0.0
      %1189 = vmatpush1.msra.mxu0 %v1163
      %1190 = vmatprep.subr.mxu0 0.0
      %1191 = vmatpush1.msra.mxu0 %v1164
      %1192 = vmatprep.subr.mxu0 0.0
      %1193 = vmatpush1.msra.mxu0 %v1165
      %1194 = vmatprep.subr.mxu0 0.0
      %1195 = vmatpush1.msra.mxu0 %v1166
      %1196 = vmatprep.subr.mxu0 0.0
      %1197 = vmatpush1.msra.mxu0 %v1167
      %1198 = vmatprep.subr.mxu0 0.0
      %1199 = vmatpush1.msra.mxu0 %v1168
      %1200 = vmatprep.subr.mxu0 0.0
      %1201 = vmatpush1.msra.mxu0 %v1169
      %1202 = vmatprep.subr.mxu0 0.0
      %1203 = vmatpush1.msra.mxu0 0.0
      %1204 = vmatprep.subr.mxu0 0.0
      %1205 = vmatpush1.msra.mxu0 0.0
      %1206 = vmatprep.subr.mxu0 0.0
      %1207 = vmatpush1.msra.mxu0 0.0
      %1208 = vmatprep.subr.mxu0 0.0
      %1209 = vmatpush1.msra.mxu0 0.0
      %1210 = vmatprep.subr.mxu0 0.0
      %1211 = vmatpush1.msra.mxu0 0.0
      %1212 = vmatprep.subr.mxu0 0.0
      %1213 = vmatpush1.msra.mxu0 0.0
      %1214 = vmatprep.subr.mxu0 0.0
      %1215 = vmatpush1.msra.mxu0 0.0
      %1216 = vmatprep.subr.mxu0 0.0
      %1217 = vmatpush1.msra.mxu0 0.0
      %1218 = vmatprep.subr.mxu0 0.0
      %1219 = vmatpush1.msra.mxu0 0.0
      %1220 = vmatprep.subr.mxu0 0.0
      %1221 = vmatpush1.msra.mxu0 0.0
      %1222 = vmatprep.subr.mxu0 0.0
      %1223 = vmatpush1.msra.mxu0 0.0
      %1224 = vmatprep.subr.mxu0 0.0
      %1225 = vmatpush1.msra.mxu0 0.0
      %1226 = vmatprep.subr.mxu0 0.0
      %1227 = vmatpush1.msra.mxu0 0.0
      %1228 = vmatprep.subr.mxu0 0.0
      %1229 = vmatpush1.msra.mxu0 0.0
      %1230 = vmatprep.subr.mxu0 0.0
      %1231 = vmatpush1.msra.mxu0 0.0
      %1232 = vmatprep.subr.mxu0 0.0
      %1233 = vmatpush1.msra.mxu0 0.0
      %1234 = vmatprep.mubr.f32.mxu0 0.0
      %1235 = vmatmul.mubr.f32.gmra.mrb[0].mxu0 %v1151
      %v1236 = vpop.f32.mrb[0].mxu0
      %v1237 = vadd.f32 0.0, %v1236
      %v1238 = vpop.f32.mrb[0].mxu0
      %1239 = vmatprep.mubr.f32.mxu0 0.0
      %1240 = vmatmul.mubr.f32.gmra.mrb[0].mxu0 %v1152
      %v1241 = vpop.f32.mrb[0].mxu0
      %v1242 = vadd.f32 0.0, %v1241
      %v1243 = vpop.f32.mrb[0].mxu0
      %1244 = vdwg.mxu0
      %v1245 = vld [vmem:[%s6 + $0x4] sm:$0x1]
      %v1246 = vlaneseq
      %v1247 = vshrl.u32 %v1246, 7
      %v1248 = vsub.s32 0, %v1247
      %v1249 = vrot.slane %v1245, %v1248
      %v1250 = vmul.f32 %v1237, %v1249
      %v1251 = vmul.f32 %v1242, %v1249
      %v1252 = vld [vmem:[%s7 + $0x4] sm:$0x1]
      %v1253 = vlaneseq
      %v1254 = vshrl.u32 %v1253, 7
      %v1255 = vsub.s32 0, %v1254
      %v1256 = vrot.slane %v1252, %v1255
      %v1257 = vadd.f32 %v1250, %v1256
      %v1258 = vadd.f32 %v1251, %v1256
      %v1259 = vmax.f32 %v1257, 0.0
      %v1260 = vmax.f32 %v1258, 0.0
      %s1261 = scalar_lea.vmem %s4, 48
      %v1262 = vld [vmem:[%s1261] sm:$0xff]
      %v1263 = vld [vmem:[%s1261 + $0x8] sm:$0x1]
      %v1264 = vrot.slane %v1259, 7
      %v1265 = vrot.slane %v1260, 7
      %v1266 = vsel %vm600, %v1264, %v1265
      %v1267 = vsel %vm600, %v1265, %v1264
      %v1268 = vsel %vm362, 0.0, %v1267
      %v1269 = vsel %vm363, 0.0, %v1266
      %v1270 = vrot.slane %v1259, 1
      %v1271 = vrot.slane %v1260, 1
      %v1272 = vsel %vm607, %v1270, %v1271
      %v1273 = vsel %vm607, %v1271, %v1270
      %v1274 = vsel %vm364, 0.0, %v1272
      %v1275 = vsel %vm365, 0.0, %v1273
      %v1276 = vlaneseq
      %v1277 = vshrl.u32 %v1276, 7
      %v1278 = vsub.s32 0, %v1277
      %v1279 = vrot.slane %v1262, %v1278
      %v1280 = vmul.f32 %v1268, %v1279
      %v1281 = vmul.f32 %v1269, %v1279
      %v1282 = vlaneseq
      %v1283 = vshrl.u32 %v1282, 7
      %v1284 = vsub.s32 3, %v1283
      %v1285 = vrot.slane %v1262, %v1284
      %v1286 = vmul.f32 %v1259, %v1285
      %v1287 = vmul.f32 %v1260, %v1285
      %v1288 = vadd.f32 %v1280, %v1286
      %v1289 = vadd.f32 %v1281, %v1287
      %v1290 = vlaneseq
      %v1291 = vshrl.u32 %v1290, 7
      %v1292 = vsub.s32 6, %v1291
      %v1293 = vrot.slane %v1262, %v1292
      %v1294 = vmul.f32 %v1274, %v1293
      %v1295 = vmul.f32 %v1275, %v1293
      %v1296 = vadd.f32 %v1288, %v1294
      %v1297 = vadd.f32 %v1289, %v1295
      %v1298 = vlaneseq
      %v1299 = vshrl.u32 %v1298, 7
      %v1300 = vsub.s32 1, %v1299
      %v1301 = vrot.slane %v1262, %v1300
      %v1302 = vmul.f32 %v1268, %v1301
      %v1303 = vmul.f32 %v1269, %v1301
      %v1304 = vlaneseq
      %v1305 = vshrl.u32 %v1304, 7
      %v1306 = vsub.s32 4, %v1305
      %v1307 = vrot.slane %v1262, %v1306
      %v1308 = vmul.f32 %v1259, %v1307
      %v1309 = vmul.f32 %v1260, %v1307
      %v1310 = vadd.f32 %v1302, %v1308
      %v1311 = vadd.f32 %v1303, %v1309
      %v1312 = vlaneseq
      %v1313 = vshrl.u32 %v1312, 7
      %v1314 = vsub.s32 7, %v1313
      %v1315 = vrot.slane %v1262, %v1314
      %v1316 = vmul.f32 %v1274, %v1315
      %v1317 = vmul.f32 %v1275, %v1315
      %v1318 = vadd.f32 %v1310, %v1316
      %v1319 = vadd.f32 %v1311, %v1317
      %v1320 = vlaneseq
      %v1321 = vshrl.u32 %v1320, 7
      %v1322 = vsub.s32 2, %v1321
      %v1323 = vrot.slane %v1262, %v1322
      %v1324 = vmul.f32 %v1268, %v1323
      %v1325 = vmul.f32 %v1269, %v1323
      %v1326 = vlaneseq
      %v1327 = vshrl.u32 %v1326, 7
      %v1328 = vsub.s32 5, %v1327
      %v1329 = vrot.slane %v1262, %v1328
      %v1330 = vmul.f32 %v1259, %v1329
      %v1331 = vmul.f32 %v1260, %v1329
      %v1332 = vadd.f32 %v1324, %v1330
      %v1333 = vadd.f32 %v1325, %v1331
      %v1334 = vlaneseq
      %v1335 = vshrl.u32 %v1334, 7
      %v1336 = vsub.s32 0, %v1335
      %v1337 = vrot.slane %v1263, %v1336
      %v1338 = vmul.f32 %v1274, %v1337
      %v1339 = vmul.f32 %v1275, %v1337
      %v1340 = vadd.f32 %v1332, %v1338
      %v1341 = vadd.f32 %v1333, %v1339
      %1342 = vrot.lane.b32.xlu0 %v1296, 8
      %v1343 = vpop.permute.xlu0 %1342
      %1344 = vrot.lane.b32.xlu0 %v1297, 8
      %v1345 = vpop.permute.xlu0 %1344
      %v1346 = vsel %vm366, 0.0, %v1343
      %v1347 = vsel %vm366, 0.0, %v1345
      %v1348 = vadd.f32 %v1346, %v1318
      %v1349 = vadd.f32 %v1347, %v1319
      %1350 = vrot.lane.b32.xlu0 %v1340, 120
      %v1351 = vpop.permute.xlu0 %1350
      %1352 = vrot.lane.b32.xlu0 %v1341, 120
      %v1353 = vpop.permute.xlu0 %1352
      %v1354 = vsel %vm367, 0.0, %v1351
      %v1355 = vsel %vm367, 0.0, %v1353
      %v1356 = vadd.f32 %v1348, %v1354
      %v1357 = vadd.f32 %v1349, %v1355
      %s1358 = scalar_lea.vmem %s5, 384
      %v1359 = vld [vmem:[%s1358] sm:$0xff]
      %v1360 = vld [vmem:[%s1358 + $0x8] sm:$0xff]
      %v1361 = vld [vmem:[%s1358 + $0x10] sm:$0xff]
      %v1362 = vld [vmem:[%s1358 + $0x18] sm:$0xff]
      %v1363 = vld [vmem:[%s1358 + $0x20] sm:$0xff]
      %v1364 = vld [vmem:[%s1358 + $0x28] sm:$0xff]
      %v1365 = vld [vmem:[%s1358 + $0x30] sm:$0xff]
      %v1366 = vld [vmem:[%s1358 + $0x38] sm:$0xff]
      %v1367 = vld [vmem:[%s1358 + $0x40] sm:$0xff]
      %v1368 = vld [vmem:[%s1358 + $0x48] sm:$0xff]
      %v1369 = vld [vmem:[%s1358 + $0x50] sm:$0xff]
      %v1370 = vld [vmem:[%s1358 + $0x58] sm:$0xff]
      %v1371 = vld [vmem:[%s1358 + $0x60] sm:$0xff]
      %v1372 = vld [vmem:[%s1358 + $0x68] sm:$0xff]
      %v1373 = vld [vmem:[%s1358 + $0x70] sm:$0xff]
      %v1374 = vld [vmem:[%s1358 + $0x78] sm:$0xff]
      %1375 = vmatprep.subr.mxu0 0.0
      %1376 = vmatpush1.msra.mxu0 %v1359
      %1377 = vmatprep.subr.mxu0 0.0
      %1378 = vmatpush1.msra.mxu0 %v1360
      %1379 = vmatprep.subr.mxu0 0.0
      %1380 = vmatpush1.msra.mxu0 %v1361
      %1381 = vmatprep.subr.mxu0 0.0
      %1382 = vmatpush1.msra.mxu0 %v1362
      %1383 = vmatprep.subr.mxu0 0.0
      %1384 = vmatpush1.msra.mxu0 %v1363
      %1385 = vmatprep.subr.mxu0 0.0
      %1386 = vmatpush1.msra.mxu0 %v1364
      %1387 = vmatprep.subr.mxu0 0.0
      %1388 = vmatpush1.msra.mxu0 %v1365
      %1389 = vmatprep.subr.mxu0 0.0
      %1390 = vmatpush1.msra.mxu0 %v1366
      %1391 = vmatprep.subr.mxu0 0.0
      %1392 = vmatpush1.msra.mxu0 %v1367
      %1393 = vmatprep.subr.mxu0 0.0
      %1394 = vmatpush1.msra.mxu0 %v1368
      %1395 = vmatprep.subr.mxu0 0.0
      %1396 = vmatpush1.msra.mxu0 %v1369
      %1397 = vmatprep.subr.mxu0 0.0
      %1398 = vmatpush1.msra.mxu0 %v1370
      %1399 = vmatprep.subr.mxu0 0.0
      %1400 = vmatpush1.msra.mxu0 %v1371
      %1401 = vmatprep.subr.mxu0 0.0
      %1402 = vmatpush1.msra.mxu0 %v1372
      %1403 = vmatprep.subr.mxu0 0.0
      %1404 = vmatpush1.msra.mxu0 %v1373
      %1405 = vmatprep.subr.mxu0 0.0
      %1406 = vmatpush1.msra.mxu0 %v1374
      %1407 = vmatprep.subr.mxu0 0.0
      %1408 = vmatpush1.msra.mxu0 0.0
      %1409 = vmatprep.subr.mxu0 0.0
      %1410 = vmatpush1.msra.mxu0 0.0
      %1411 = vmatprep.subr.mxu0 0.0
      %1412 = vmatpush1.msra.mxu0 0.0
      %1413 = vmatprep.subr.mxu0 0.0
      %1414 = vmatpush1.msra.mxu0 0.0
      %1415 = vmatprep.subr.mxu0 0.0
      %1416 = vmatpush1.msra.mxu0 0.0
      %1417 = vmatprep.subr.mxu0 0.0
      %1418 = vmatpush1.msra.mxu0 0.0
      %1419 = vmatprep.subr.mxu0 0.0
      %1420 = vmatpush1.msra.mxu0 0.0
      %1421 = vmatprep.subr.mxu0 0.0
      %1422 = vmatpush1.msra.mxu0 0.0
      %1423 = vmatprep.subr.mxu0 0.0
      %1424 = vmatpush1.msra.mxu0 0.0
      %1425 = vmatprep.subr.mxu0 0.0
      %1426 = vmatpush1.msra.mxu0 0.0
      %1427 = vmatprep.subr.mxu0 0.0
      %1428 = vmatpush1.msra.mxu0 0.0
      %1429 = vmatprep.subr.mxu0 0.0
      %1430 = vmatpush1.msra.mxu0 0.0
      %1431 = vmatprep.subr.mxu0 0.0
      %1432 = vmatpush1.msra.mxu0 0.0
      %1433 = vmatprep.subr.mxu0 0.0
      %1434 = vmatpush1.msra.mxu0 0.0
      %1435 = vmatprep.subr.mxu0 0.0
      %1436 = vmatpush1.msra.mxu0 0.0
      %1437 = vmatprep.subr.mxu0 0.0
      %1438 = vmatpush1.msra.mxu0 0.0
      %1439 = vmatprep.mubr.f32.mxu0 0.0
      %1440 = vmatmul.mubr.f32.gmra.mrb[0].mxu0 %v1356
      %v1441 = vpop.f32.mrb[0].mxu0
      %v1442 = vadd.f32 0.0, %v1441
      %v1443 = vpop.f32.mrb[0].mxu0
      %1444 = vmatprep.mubr.f32.mxu0 0.0
      %1445 = vmatmul.mubr.f32.gmra.mrb[0].mxu0 %v1357
      %v1446 = vpop.f32.mrb[0].mxu0
      %v1447 = vadd.f32 0.0, %v1446
      %v1448 = vpop.f32.mrb[0].mxu0
      %1449 = vdwg.mxu0
      %v1450 = vld [vmem:[%s6 + $0x5] sm:$0x1]
      %v1451 = vlaneseq
      %v1452 = vshrl.u32 %v1451, 7
      %v1453 = vsub.s32 0, %v1452
      %v1454 = vrot.slane %v1450, %v1453
      %v1455 = vmul.f32 %v1442, %v1454
      %v1456 = vmul.f32 %v1447, %v1454
      %v1457 = vld [vmem:[%s7 + $0x5] sm:$0x1]
      %v1458 = vlaneseq
      %v1459 = vshrl.u32 %v1458, 7
      %v1460 = vsub.s32 0, %v1459
      %v1461 = vrot.slane %v1457, %v1460
      %v1462 = vadd.f32 %v1455, %v1461
      %v1463 = vadd.f32 %v1456, %v1461
      %v1464 = vadd.f32 %v1052, %v1462
      %v1465 = vadd.f32 %v1053, %v1463
      %1466 = vst [vmem:[%s331] sm:$0xff] %v1004
      %1467 = vst [vmem:[%s331 + $0x10] sm:$0xff] %v1005
      %1468 = vst [vmem:[%s331 + $0x8] sm:$0xff] %v1464
      %1469 = vst [vmem:[%s331 + $0x18] sm:$0xff] %v1465
      %s1470 = smul.u32 2, %s19
      %p1471 = scmp.lt.s32.totalorder %s1470, 3
      %s1472 = scalar_select %p1471, %s1470, 3
      %s1473 = smul.addr %s1472, 2
      %s1474 = smul.addr %s1473, 8
      %s1475 = scalar_lea.vmem %s8, %s1474
      // Predicated region
      $region53: #{_lambda_.1} parent=51 // pred_check
        %p1476 = pneg %p215
      $region54: #{_lambda_.1} parent=51 // pred_check_branch
        %1478 = sbr.rel (%p1476) target = $region56
      $region55: #{_lambda_.1} parent=51 // pred_region
        %s1479 = smul.u32 2, %s19
      $region56: #{_lambda_.1} parent=51 // pred_fallthru
        _
    $region52: #{_lambda_.1} parent=5 // pred_fallthru
      _
    %p1480 = scmp.le.s32.totalorder 2, %s14
    // Predicated region
    $region57: #{_lambda_.1} parent=5 // pred_check
      %p1481 = pneg %p1480
    $region58: #{_lambda_.1} parent=5 // pred_check_branch
      %1483 = sbr.rel (%p1481) target = $region60
    $region59: #{_lambda_.1} parent=5 // pred_region
      %s1484 = ssub.s32 %s14, 2
      // Predicated region
      $region61: #{_lambda_.1} parent=59 // pred_check
        %p1485 = pneg %p221
      $region62: #{_lambda_.1} parent=59 // pred_check_branch
        %1487 = sbr.rel (%p1485) target = $region64
      $region63: #{_lambda_.1} parent=59 // pred_region
        %s1488 = smul.u32 2, %s20
        %p1489 = scmp.lt.s32.totalorder %s1488, 3
        %s1490 = scalar_select %p1489, %s1488, 3
        %s1491 = smul.addr %s1490, 2
        %s1492 = smul.addr %s1491, 8
        %s1493 = scalar_lea.vmem %s8, %s1492
      $region64: #{_lambda_.1} parent=59 // pred_fallthru
        _
    $region60: #{_lambda_.1} parent=5 // pred_fallthru
      _
  $region6: #{_lambda_.1} parent=0 // loop_footer
    %s18 = sadd.s32 1, %s14
  $region7: #{_lambda_.1} parent=0 // loop_footer_branch
    %13 = sbr.rel target = $region3
  $region8: #{_lambda_.1} parent=0 // loop_exit
    _

</llo_original>
